<compile_context>
chip_gen: v5e
topology: v5e:2x2
jax: 0.10.0
libtpu: 0.0.40
codegen_flags: <defaults>
</compile_context>

<pallas_src>
import jax
import jax.numpy as jnp
from jax import lax
from jax.experimental import pallas as pl
from jax.experimental.pallas import tpu as pltpu


# ---------------------------------------------------------------------------
# Pallas kernel: one batch-tile (BT elements) of the seq2seq forward
# ---------------------------------------------------------------------------
def seq2seq_kernel(src_emb_ref, tgt_emb_ref, src_bias_ref,
                   w_enc_ref, b_enc_ref,
                   w_q_ref, w_dec_ref,
                   w_out_ref, b_out_ref,
                   out_ref):
    BT, S_src, H = src_emb_ref.shape
    _, S_tgt, _ = tgt_emb_ref.shape

    # Flatten (batch_tile, seq) so every weight matmul has M = BT*S (=128).
    src2d = src_emb_ref[...].reshape(BT * S_src, H)            # bf16 [128, H]
    tgt2d = tgt_emb_ref[...].reshape(BT * S_tgt, H)            # bf16 [128, H]

    # ---- encoder: linear + bias + relu (fused M) ---------------------------
    enc2d = jnp.dot(src2d, w_enc_ref[...],
                    preferred_element_type=jnp.float32) + b_enc_ref[...]
    enc2d = jnp.maximum(enc2d, 0.0)                            # f32 [BT*S_src, H]

    # ---- cross-attention query (fused M) -----------------------------------
    q2d = jnp.dot(tgt2d, w_q_ref[...],
                  preferred_element_type=jnp.float32)          # f32 [BT*S_tgt, H]

    enc_b = enc2d.reshape(BT, S_src, H).astype(jnp.bfloat16)
    q_b = q2d.reshape(BT, S_tgt, H).astype(jnp.bfloat16)

    scale = H ** -0.5
    # Batched contraction over H; no materialized transpose of enc.
    scores = lax.dot_general(
        q_b, enc_b,
        dimension_numbers=(((2,), (2,)), ((0,), (0,))),
        preferred_element_type=jnp.float32) * scale            # [BT, S_tgt, S_src]

    # Additive -inf mask for padded source positions (per batch element).
    scores = scores + src_bias_ref[...][:, None, :]

    # Numerically stable softmax over the source axis.
    m = jnp.max(scores, axis=-1, keepdims=True)
    p = jnp.exp(scores - m)
    denom = jnp.sum(p, axis=-1, keepdims=True)
    attn = p * pl.reciprocal(denom, approx=True)               # [BT, S_tgt, S_src]

    ctx = lax.dot_general(
        attn.astype(jnp.bfloat16), enc_b,
        dimension_numbers=(((2,), (1,)), ((0,), (0,))),
        preferred_element_type=jnp.float32)                    # [BT, S_tgt, H]

    ctx2d = ctx.reshape(BT * S_tgt, H)

    # ---- decoder projection + residual + relu (fused M) --------------------
    h = jnp.dot(ctx2d.astype(jnp.bfloat16), w_dec_ref[...],
                preferred_element_type=jnp.float32) + tgt2d.astype(jnp.float32)
    h = jnp.maximum(h, 0.0)                                    # f32 [BT*S_tgt, H]

    # ---- vocab logits (fused M) --------------------------------------------
    logits = jnp.dot(h.astype(jnp.bfloat16), w_out_ref[...],
                     preferred_element_type=jnp.float32) + b_out_ref[...]
    out_ref[...] = logits.reshape(BT, S_tgt, -1).astype(out_ref.dtype)


# ---------------------------------------------------------------------------
# Wrapper
# ---------------------------------------------------------------------------
def seq2seq_forward(src_tokens, tgt_tokens, params, src_seq_len=None, *,
                    batch_tile=8):
    """src_tokens: [B, S_src] int32, tgt_tokens: [B, S_tgt] int32.

    Returns logits [B, S_tgt, V] float32 (the value the PyTorch
    `SequenceGeneratorModel.forward` passes through from the underlying
    seq2seq model).
    """
    embed = params["embed"]            # [V, H] bf16
    B, S_src = src_tokens.shape
    _, S_tgt = tgt_tokens.shape
    V, H = embed.shape
    BT = batch_tile
    assert B % BT == 0, "batch must be a multiple of the batch tile"

    # Embedding lookup (gather) is glue, done in plain JAX.
    # TODO(synk): fuse the gather into the kernel via PrefetchScalarGridSpec +
    # pl.Element row-gather to save the HBM round trip at non-toy sizes.
    src_emb = jnp.take(embed, src_tokens, axis=0)   # [B, S_src, H] bf16
    tgt_emb = jnp.take(embed, tgt_tokens, axis=0)   # [B, S_tgt, H] bf16

    # Additive attention bias: 0 for valid source positions, -1e30 for pad.
    if src_seq_len is None:
        src_seq_len = jnp.full((B,), S_src, jnp.int32)
    positions = lax.broadcasted_iota(jnp.int32, (B, S_src), 1)
    src_bias = jnp.where(positions < src_seq_len[:, None],
                         0.0, -1e30).astype(jnp.float32)

    full = lambda *_: (0, 0)
    grid_spec = pltpu.PrefetchScalarGridSpec(
        num_scalar_prefetch=0,
        grid=(B // BT,),
        in_specs=[
            pl.BlockSpec((BT, S_src, H), lambda b: (b, 0, 0)),   # src_emb
            pl.BlockSpec((BT, S_tgt, H), lambda b: (b, 0, 0)),   # tgt_emb
            pl.BlockSpec((BT, S_src), lambda b: (b, 0)),         # src_bias
            pl.BlockSpec((H, H), full),      # w_enc (bf16, VMEM-resident)
            pl.BlockSpec((1, H), full),      # b_enc
            pl.BlockSpec((H, H), full),      # w_q
            pl.BlockSpec((H, H), full),      # w_dec
            # TODO(synk): tile over V (second grid axis) for realistic vocab
            # sizes; at V=256 the full bf16 weight trivially fits VMEM.
            pl.BlockSpec((H, V), full),      # w_out
            pl.BlockSpec((1, V), full),      # b_out
        ],
        out_specs=pl.BlockSpec((BT, S_tgt, V), lambda b: (b, 0, 0)),
    )

    return pl.pallas_call(
        seq2seq_kernel,
        out_shape=jax.ShapeDtypeStruct((B, S_tgt, V), jnp.float32),
        grid_spec=grid_spec,
        compiler_params=pltpu.CompilerParams(
            dimension_semantics=("parallel",)),
    )(src_emb, tgt_emb, src_bias,
      params["w_enc"], params["b_enc"],
      params["w_q"], params["w_dec"],
      params["w_out"], params["b_out"])


# ---------------------------------------------------------------------------
# Deterministic parameter init + example run
# ---------------------------------------------------------------------------
def init_params(key, vocab_size, hidden):
    ks = jax.random.split(key, 6)
    s = 0.02
    bf = jnp.bfloat16
    return {
        # Weights / embeddings in bf16 (halves DMA bytes, 2x MXU on v6e/v7x);
        # biases kept f32 for the f32 VPU epilogue (also safe on v5e).
        "embed": (jax.random.normal(ks[0], (vocab_size, hidden)) * s).astype(bf),
        "w_enc": (jax.random.normal(ks[1], (hidden, hidden)) * s).astype(bf),
        "b_enc": jnp.zeros((1, hidden), jnp.float32),
        "w_q":   (jax.random.normal(ks[2], (hidden, hidden)) * s).astype(bf),
        "w_dec": (jax.random.normal(ks[3], (hidden, hidden)) * s).astype(bf),
        "w_out": (jax.random.normal(ks[4], (hidden, vocab_size)) * s).astype(bf),
        "b_out": jnp.zeros((1, vocab_size), jnp.float32),
    }


if __name__ == "__main__":
    # BT * S_TGT = 8 * 16 = 128 fused rows per grid step -> full MXU M dim;
    # grid has 2 parallel steps (keeps both v7x TensorCores busy).
    B, S_SRC, S_TGT, H, V = 16, 16, 16, 128, 256
    BT = 8

    key = jax.random.PRNGKey(0)
    k_param, k_src, k_tgt, k_len = jax.random.split(key, 4)

    params = init_params(k_param, V, H)
    src_tokens = jax.random.randint(k_src, (B, S_SRC), 0, V, dtype=jnp.int32)
    tgt_tokens = jax.random.randint(k_tgt, (B, S_TGT), 0, V, dtype=jnp.int32)
    src_seq_len = jax.random.randint(k_len, (B,), S_SRC // 2, S_SRC + 1,
                                     dtype=jnp.int32)

    logits = seq2seq_forward(src_tokens, tgt_tokens, params, src_seq_len,
                             batch_tile=BT)
    jax.block_until_ready(logits)

    assert logits.shape == (B, S_TGT, V)
    assert bool(jnp.all(jnp.isfinite(logits)))
    print("KERNEL_OK")
</pallas_src>

<mosaic_0001>
module attributes {stable_mosaic.version = 11 : i64} {
  func.func @seq2seq_kernel(%arg0: i32, %arg1: memref<8x16x128xbf16, #tpu.memory_space<vmem>>, %arg2: memref<8x16x128xbf16, #tpu.memory_space<vmem>>, %arg3: memref<8x16xf32, #tpu.memory_space<vmem>>, %arg4: memref<128x128xbf16, #tpu.memory_space<vmem>>, %arg5: memref<1x128xf32, #tpu.memory_space<vmem>>, %arg6: memref<128x128xbf16, #tpu.memory_space<vmem>>, %arg7: memref<128x128xbf16, #tpu.memory_space<vmem>>, %arg8: memref<128x256xbf16, #tpu.memory_space<vmem>>, %arg9: memref<1x256xf32, #tpu.memory_space<vmem>>, %arg10: memref<8x16x256xf32, #tpu.memory_space<vmem>>) attributes {dimension_semantics = [#tpu.dimension_semantics<parallel>], iteration_bounds = array<i64: 2>, scalar_prefetch = 0 : i64, scratch_operands = 0 : i64, tpu.core_type = #tpu.core_type<tc>, window_params = [{transform_indices = @transform_0, window_bounds = array<i64: 8, 16, 128>}, {transform_indices = @transform_1, window_bounds = array<i64: 8, 16, 128>}, {transform_indices = @transform_2, window_bounds = array<i64: 8, 16>}, {pipeline_mode = #tpu.pipeline_mode<synchronous>, transform_indices = @transform_3, window_bounds = array<i64: 128, 128>}, {pipeline_mode = #tpu.pipeline_mode<synchronous>, transform_indices = @transform_4, window_bounds = array<i64: 1, 128>}, {pipeline_mode = #tpu.pipeline_mode<synchronous>, transform_indices = @transform_5, window_bounds = array<i64: 128, 128>}, {pipeline_mode = #tpu.pipeline_mode<synchronous>, transform_indices = @transform_6, window_bounds = array<i64: 128, 128>}, {pipeline_mode = #tpu.pipeline_mode<synchronous>, transform_indices = @transform_7, window_bounds = array<i64: 128, 256>}, {pipeline_mode = #tpu.pipeline_mode<synchronous>, transform_indices = @transform_8, window_bounds = array<i64: 1, 256>}, {transform_indices = @transform_9, window_bounds = array<i64: 8, 16, 256>}]} {
    %c0 = arith.constant 0 : index
    %c0_0 = arith.constant 0 : index
    %c0_1 = arith.constant 0 : index
    %0 = vector.load %arg1[%c0, %c0_0, %c0_1] : memref<8x16x128xbf16, #tpu.memory_space<vmem>>, vector<8x16x128xbf16>
    %1 = vector.shape_cast %0 : vector<8x16x128xbf16> to vector<128x128xbf16>
    %c0_2 = arith.constant 0 : index
    %c0_3 = arith.constant 0 : index
    %c0_4 = arith.constant 0 : index
    %2 = vector.load %arg2[%c0_2, %c0_3, %c0_4] : memref<8x16x128xbf16, #tpu.memory_space<vmem>>, vector<8x16x128xbf16>
    %3 = vector.shape_cast %2 : vector<8x16x128xbf16> to vector<128x128xbf16>
    %c0_5 = arith.constant 0 : index
    %c0_6 = arith.constant 0 : index
    %4 = vector.load %arg4[%c0_5, %c0_6] : memref<128x128xbf16, #tpu.memory_space<vmem>>, vector<128x128xbf16>
    %cst = arith.constant dense<0.000000e+00> : vector<128x128xf32>
    %5 = tpu.matmul %1, %4, %cst {dimension_numbers = #tpu.dot_dimension_numbers<[1], [0], [0], [1], [0, 0, 1, 1], [], []>} : vector<128x128xbf16>, vector<128x128xbf16>, vector<128x128xf32> -> vector<128x128xf32>
    %c0_7 = arith.constant 0 : index
    %c0_8 = arith.constant 0 : index
    %6 = vector.load %arg5[%c0_7, %c0_8] : memref<1x128xf32, #tpu.memory_space<vmem>>, vector<1x128xf32>
    %7 = vector.broadcast %6 : vector<1x128xf32> to vector<128x128xf32>
    %8 = arith.addf %5, %7 : vector<128x128xf32>
    %cst_9 = arith.constant 0.000000e+00 : f32
    %9 = vector.broadcast %cst_9 : f32 to vector<128x128xf32>
    %10 = arith.maximumf %8, %9 : vector<128x128xf32>
    %c0_10 = arith.constant 0 : index
    %c0_11 = arith.constant 0 : index
    %11 = vector.load %arg6[%c0_10, %c0_11] : memref<128x128xbf16, #tpu.memory_space<vmem>>, vector<128x128xbf16>
    %cst_12 = arith.constant dense<0.000000e+00> : vector<128x128xf32>
    %12 = tpu.matmul %3, %11, %cst_12 {dimension_numbers = #tpu.dot_dimension_numbers<[1], [0], [0], [1], [0, 0, 1, 1], [], []>} : vector<128x128xbf16>, vector<128x128xbf16>, vector<128x128xf32> -> vector<128x128xf32>
    %13 = vector.shape_cast %10 : vector<128x128xf32> to vector<8x16x128xf32>
    %14 = arith.truncf %13 : vector<8x16x128xf32> to vector<8x16x128xbf16>
    %15 = vector.shape_cast %12 : vector<128x128xf32> to vector<8x16x128xf32>
    %16 = arith.truncf %15 : vector<8x16x128xf32> to vector<8x16x128xbf16>
    %cst_13 = arith.constant dense<0.000000e+00> : vector<8x16x16xf32>
    %17 = tpu.matmul %16, %14, %cst_13 {dimension_numbers = #tpu.dot_dimension_numbers<[2], [2], [1], [1], [0, 0, 0, 1, 1, 1], [0], [0]>} : vector<8x16x128xbf16>, vector<8x16x128xbf16>, vector<8x16x16xf32> -> vector<8x16x16xf32>
    %cst_14 = arith.constant 0.0883883461 : f32
    %18 = vector.broadcast %cst_14 : f32 to vector<8x16x16xf32>
    %19 = arith.mulf %17, %18 : vector<8x16x16xf32>
    %c0_15 = arith.constant 0 : index
    %c0_16 = arith.constant 0 : index
    %20 = vector.load %arg3[%c0_15, %c0_16] : memref<8x16xf32, #tpu.memory_space<vmem>>, vector<8x16xf32>
    %21 = vector.shape_cast %20 : vector<8x16xf32> to vector<8x1x16xf32>
    %22 = vector.broadcast %21 : vector<8x1x16xf32> to vector<8x16x16xf32>
    %23 = arith.addf %19, %22 : vector<8x16x16xf32>
    %cst_17 = arith.constant dense<0xFF800000> : vector<8x16xf32>
    %24 = vector.multi_reduction <maximumf>, %23, %cst_17 [2] : vector<8x16x16xf32> to vector<8x16xf32>
    %25 = vector.shape_cast %24 : vector<8x16xf32> to vector<8x16x1xf32>
    %26 = vector.broadcast %25 : vector<8x16x1xf32> to vector<8x16x16xf32>
    %27 = arith.subf %23, %26 : vector<8x16x16xf32>
    %28 = math.exp %27 : vector<8x16x16xf32>
    %cst_18 = arith.constant dense<0.000000e+00> : vector<8x16xf32>
    %29 = vector.multi_reduction <add>, %28, %cst_18 [2] : vector<8x16x16xf32> to vector<8x16xf32>
    %30 = vector.shape_cast %29 : vector<8x16xf32> to vector<8x16x1xf32>
    %31 = tpu.reciprocal %30 {approx = true} : vector<8x16x1xf32> -> vector<8x16x1xf32>
    %32 = vector.broadcast %31 : vector<8x16x1xf32> to vector<8x16x16xf32>
    %33 = arith.mulf %28, %32 : vector<8x16x16xf32>
    %34 = arith.truncf %33 : vector<8x16x16xf32> to vector<8x16x16xbf16>
    %cst_19 = arith.constant dense<0.000000e+00> : vector<8x16x128xf32>
    %35 = tpu.matmul %34, %14, %cst_19 {dimension_numbers = #tpu.dot_dimension_numbers<[2], [1], [1], [2], [0, 0, 0, 1, 1, 2], [0], [0]>} : vector<8x16x16xbf16>, vector<8x16x128xbf16>, vector<8x16x128xf32> -> vector<8x16x128xf32>
    %36 = vector.shape_cast %35 : vector<8x16x128xf32> to vector<128x128xf32>
    %37 = arith.truncf %36 : vector<128x128xf32> to vector<128x128xbf16>
    %c0_20 = arith.constant 0 : index
    %c0_21 = arith.constant 0 : index
    %38 = vector.load %arg7[%c0_20, %c0_21] : memref<128x128xbf16, #tpu.memory_space<vmem>>, vector<128x128xbf16>
    %cst_22 = arith.constant dense<0.000000e+00> : vector<128x128xf32>
    %39 = tpu.matmul %37, %38, %cst_22 {dimension_numbers = #tpu.dot_dimension_numbers<[1], [0], [0], [1], [0, 0, 1, 1], [], []>} : vector<128x128xbf16>, vector<128x128xbf16>, vector<128x128xf32> -> vector<128x128xf32>
    %40 = arith.extf %3 : vector<128x128xbf16> to vector<128x128xf32>
    %41 = arith.addf %39, %40 : vector<128x128xf32>
    %cst_23 = arith.constant 0.000000e+00 : f32
    %42 = vector.broadcast %cst_23 : f32 to vector<128x128xf32>
    %43 = arith.maximumf %41, %42 : vector<128x128xf32>
    %44 = arith.truncf %43 : vector<128x128xf32> to vector<128x128xbf16>
    %c0_24 = arith.constant 0 : index
    %c0_25 = arith.constant 0 : index
    %45 = vector.load %arg8[%c0_24, %c0_25] : memref<128x256xbf16, #tpu.memory_space<vmem>>, vector<128x256xbf16>
    %cst_26 = arith.constant dense<0.000000e+00> : vector<128x256xf32>
    %46 = tpu.matmul %44, %45, %cst_26 {dimension_numbers = #tpu.dot_dimension_numbers<[1], [0], [0], [1], [0, 0, 1, 1], [], []>} : vector<128x128xbf16>, vector<128x256xbf16>, vector<128x256xf32> -> vector<128x256xf32>
    %c0_27 = arith.constant 0 : index
    %c0_28 = arith.constant 0 : index
    %47 = vector.load %arg9[%c0_27, %c0_28] : memref<1x256xf32, #tpu.memory_space<vmem>>, vector<1x256xf32>
    %48 = vector.broadcast %47 : vector<1x256xf32> to vector<128x256xf32>
    %49 = arith.addf %46, %48 : vector<128x256xf32>
    %50 = vector.shape_cast %49 : vector<128x256xf32> to vector<8x16x256xf32>
    %c0_29 = arith.constant 0 : index
    %c0_30 = arith.constant 0 : index
    %c0_31 = arith.constant 0 : index
    %51 = vector.load %arg10[%c0_29, %c0_30, %c0_31] : memref<8x16x256xf32, #tpu.memory_space<vmem>>, vector<8x16x256xf32>
    tpu.vector_store %arg10[%c0_29, %c0_30, %c0_31], %50 {strides = array<i32>} : memref<8x16x256xf32, #tpu.memory_space<vmem>>, vector<8x16x256xf32>,
    return
  }
  func.func @transform_0(%arg0: i32) -> (i32, i32, i32) {
    %c0_i32 = arith.constant 0 : i32
    %c0_i32_0 = arith.constant 0 : i32
    %c0_i32_1 = arith.constant 0 : i32
    return %arg0, %c0_i32, %c0_i32_0 : i32, i32, i32
  }
  func.func @transform_1(%arg0: i32) -> (i32, i32, i32) {
    %c0_i32 = arith.constant 0 : i32
    %c0_i32_0 = arith.constant 0 : i32
    %c0_i32_1 = arith.constant 0 : i32
    return %arg0, %c0_i32, %c0_i32_0 : i32, i32, i32
  }
  func.func @transform_2(%arg0: i32) -> (i32, i32) {
    %c0_i32 = arith.constant 0 : i32
    %c0_i32_0 = arith.constant 0 : i32
    return %arg0, %c0_i32 : i32, i32
  }
  func.func @transform_3(%arg0: i32) -> (i32, i32) {
    %c0_i32 = arith.constant 0 : i32
    %c0_i32_0 = arith.constant 0 : i32
    %c0_i32_1 = arith.constant 0 : i32
    return %c0_i32, %c0_i32_0 : i32, i32
  }
  func.func @transform_4(%arg0: i32) -> (i32, i32) {
    %c0_i32 = arith.constant 0 : i32
    %c0_i32_0 = arith.constant 0 : i32
    %c0_i32_1 = arith.constant 0 : i32
    return %c0_i32, %c0_i32_0 : i32, i32
  }
  func.func @transform_5(%arg0: i32) -> (i32, i32) {
    %c0_i32 = arith.constant 0 : i32
    %c0_i32_0 = arith.constant 0 : i32
    %c0_i32_1 = arith.constant 0 : i32
    return %c0_i32, %c0_i32_0 : i32, i32
  }
  func.func @transform_6(%arg0: i32) -> (i32, i32) {
    %c0_i32 = arith.constant 0 : i32
    %c0_i32_0 = arith.constant 0 : i32
    %c0_i32_1 = arith.constant 0 : i32
    return %c0_i32, %c0_i32_0 : i32, i32
  }
  func.func @transform_7(%arg0: i32) -> (i32, i32) {
    %c0_i32 = arith.constant 0 : i32
    %c0_i32_0 = arith.constant 0 : i32
    %c0_i32_1 = arith.constant 0 : i32
    return %c0_i32, %c0_i32_0 : i32, i32
  }
  func.func @transform_8(%arg0: i32) -> (i32, i32) {
    %c0_i32 = arith.constant 0 : i32
    %c0_i32_0 = arith.constant 0 : i32
    %c0_i32_1 = arith.constant 0 : i32
    return %c0_i32, %c0_i32_0 : i32, i32
  }
  func.func @transform_9(%arg0: i32) -> (i32, i32, i32) {
    %c0_i32 = arith.constant 0 : i32
    %c0_i32_0 = arith.constant 0 : i32
    %c0_i32_1 = arith.constant 0 : i32
    return %arg0, %c0_i32, %c0_i32_0 : i32, i32, i32
  }
}

</mosaic_0001>

<llo_original>
// kernel: tpu_custom_call.1
$region0: #{tpu_custom_call.1}
  #allocation0 [shape = 'u32[]', space=smem, size = 0x4, offset = 0x4, fixed_abs, tag = 'smem constant byte address 0x4 - core index']
  #allocation1 [shape = 'u32[72,128]{1,0:T(1,128)}', space=vmem, size = 0x9000, scoped, tag = 'internal scratch']
  %s0 = inlined_call_operand.hbm [shape: bf16[16,16,128], index: 0, kind: input, shape index: {}]
  %s1 = inlined_call_operand.hbm [shape: bf16[16,16,128], index: 1, kind: input, shape index: {}]
  %s2 = inlined_call_operand.hbm [shape: f32[16,16], index: 2, kind: input, shape index: {}]
  %s3 = inlined_call_operand.hbm [shape: bf16[128,128], index: 3, kind: input, shape index: {}]
  %s4 = inlined_call_operand.vmem [shape: f32[1,128], index: 4, kind: input, shape index: {}]
  %s5 = inlined_call_operand.hbm [shape: bf16[128,128], index: 5, kind: input, shape index: {}]
  %s6 = inlined_call_operand.hbm [shape: bf16[128,128], index: 6, kind: input, shape index: {}]
  %s7 = inlined_call_operand.hbm [shape: bf16[128,256], index: 7, kind: input, shape index: {}]
  %s8 = inlined_call_operand.vmem [shape: f32[1,256], index: 8, kind: input, shape index: {}]
  %s9 = inlined_call_operand.hbm [shape: f32[16,16,256], index: 9, kind: output, shape index: {}]
  %s10 = sld [smem:[#allocation0]]
  $region97: #{tpu_custom_call.1} parent=0
    _
  %s12 = ssub.s32 1, %s10
  %s13 = scalar_select 0, %s12, %s10
  $region1: #{tpu_custom_call.1} parent=0
    #allocation2 [shape = 'u8[65536]{0}', space=vmem, size = 0x10000, scoped, tag = 'input window, operand 0']
    #allocation3 [shape = 's32[2]{0}', space=sflag, size = 0x8, scoped, tag = 'scoped memory for tpu_custom_call.1']
    #allocation4 [shape = 's32[2]{0}', space=sflag, size = 0x8, scoped, tag = 'scoped memory for tpu_custom_call.1']
    #allocation5 [shape = 'u8[65536]{0}', space=vmem, size = 0x10000, scoped, tag = 'input window, operand 1']
    #allocation6 [shape = 's32[2]{0}', space=sflag, size = 0x8, scoped, tag = 'scoped memory for tpu_custom_call.1']
    #allocation7 [shape = 'u8[8192]{0}', space=vmem, size = 0x2000, scoped, tag = 'input window, operand 2']
    #allocation8 [shape = 'u8[32768]{0}', space=vmem, size = 0x8000, scoped, tag = 'input window, operand 3, single buffered']
    #allocation9 [shape = 's32[1]{0}', space=sflag, size = 0x4, scoped, tag = 'scoped memory for tpu_custom_call.1']
    #allocation10 [shape = 'u8[32768]{0}', space=vmem, size = 0x8000, scoped, tag = 'input window, operand 5, single buffered']
    #allocation11 [shape = 'u8[32768]{0}', space=vmem, size = 0x8000, scoped, tag = 'input window, operand 6, single buffered']
    #allocation12 [shape = 's32[1]{0}', space=sflag, size = 0x4, scoped, tag = 'scoped memory for tpu_custom_call.1']
    #allocation13 [shape = 'u8[65536]{0}', space=vmem, size = 0x10000, scoped, tag = 'input window, operand 7, single buffered']
    #allocation14 [shape = 'u8[262144]{0}', space=vmem, size = 0x40000, scoped, tag = 'output window, operand 0']
    %14 = vsyncpa [#allocation3], 0
    %s15 = scalar_lea.sflag [#allocation3], 1
    %16 = vsyncpa %s15, 0
    %17 = vsyncpa [#allocation6], 0
    %s18 = scalar_lea.sflag [#allocation6], 1
    %19 = vsyncpa %s18, 0
    %20 = vsyncpa [#allocation9], 0
    %21 = vsyncpa [#allocation12], 0
    %22 = vsyncpa [#allocation4], 0
    %s23 = scalar_lea.sflag [#allocation4], 1
    %24 = vsyncpa %s23, 0
    loop: start=0, step=1, limit=4
    $region2: #{tpu_custom_call.1} parent=1 // loop_pre_header
      _
    $region3: #{tpu_custom_call.1} parent=1 // loop_header
      %s26 = sphi 0, %s30
      %p27 = scmp.ge.s32.totalorder %s26, 4
      %s36 = sphi 0, %s38
      %s39 = sphi 0, %s36
      %s40 = sphi 0, %s39
      %s56 = sphi 0, %s40
      %s62 = sphi 0, %s64
      %s65 = sphi 0, %s62
      %s66 = sphi 0, %s65
      %s82 = sphi 0, %s66
      %s88 = sphi 0, %s90
      %s91 = sphi 0, %s88
      %s92 = sphi 0, %s91
      %s108 = sphi 0, %s92
      %s112 = sphi 0, %s112
      %s114 = sphi 0, %s112
      %s115 = sphi 0, %s114
      %s129 = sphi 0, %s115
      %s133 = sphi 0, %s133
      %s135 = sphi 0, %s133
      %s136 = sphi 0, %s135
      %s150 = sphi 0, %s136
      %s154 = sphi 0, %s154
      %s156 = sphi 0, %s154
      %s157 = sphi 0, %s156
      %s171 = sphi 0, %s157
      %s175 = sphi 0, %s175
      %s177 = sphi 0, %s175
      %s178 = sphi 0, %s177
      %s192 = sphi 0, %s178
      %s196 = sphi 0, %s196
      %s198 = sphi 0, %s196
      %s199 = sphi 0, %s198
      %s213 = sphi 0, %s199
      %s217 = sphi 0, %s217
      %s219 = sphi 0, %s217
      %s220 = sphi 0, %s219
      %s234 = sphi 0, %s220
      %s240 = sphi 0, %s242
      %s243 = sphi 0, %s240
      %s244 = sphi 0, %s243
      %s260 = sphi 0, %s244
    $region4: #{tpu_custom_call.1} parent=1 // loop_header_branch
      %29 = sbr.rel (%p27) target = $region8
    $region5: #{tpu_custom_call.1} parent=1 // loop_body
      %s31 = ssub.s32 %s26, 1
      %s32 = ssub.s32 %s26, 2
      %s33 = sadd.s32 %s26, 1
      %s34 = ssub.s32 %s26, %s33
      %p35 = scmp.eq.s32.totalorder %s34, 0
      %s37 = sadd.s32 %s36, 1
      %s38 = scalar_select %p35, %s36, %s37
      %p41 = pneg %p35
      %p42 = scmp.eq.s32.totalorder %s26, 1
      %p43 = por %p41, %p42
      %p44 = scmp.ne.s32.totalorder %s36, %s39
      %p45 = scmp.eq.s32.totalorder %s26, 0
      %p46 = por %p44, %p45
      %p47 = scmp.ne.s32.totalorder %s36, %s39
      %p48 = scmp.eq.s32.totalorder %s31, 1
      %p49 = por %p47, %p48
      %p50 = scmp.ne.s32.totalorder %s39, %s40
      %p51 = scmp.eq.s32.totalorder %s31, 0
      %p52 = por %p50, %p51
      %p53 = scmp.ne.s32.totalorder %s39, %s40
      %p54 = scmp.eq.s32.totalorder %s32, 1
      %p55 = por %p53, %p54
      %p57 = scmp.ne.s32.totalorder %s40, %s56
      %p58 = scmp.eq.s32.totalorder %s32, 0
      %p59 = por %p57, %p58
      %s60 = ssub.s32 %s26, %s33
      %p61 = scmp.eq.s32.totalorder %s60, 0
      %s63 = sadd.s32 %s62, 1
      %s64 = scalar_select %p61, %s62, %s63
      %p67 = pneg %p61
      %p68 = scmp.eq.s32.totalorder %s26, 1
      %p69 = por %p67, %p68
      %p70 = scmp.ne.s32.totalorder %s62, %s65
      %p71 = scmp.eq.s32.totalorder %s26, 0
      %p72 = por %p70, %p71
      %p73 = scmp.ne.s32.totalorder %s62, %s65
      %p74 = scmp.eq.s32.totalorder %s31, 1
      %p75 = por %p73, %p74
      %p76 = scmp.ne.s32.totalorder %s65, %s66
      %p77 = scmp.eq.s32.totalorder %s31, 0
      %p78 = por %p76, %p77
      %p79 = scmp.ne.s32.totalorder %s65, %s66
      %p80 = scmp.eq.s32.totalorder %s32, 1
      %p81 = por %p79, %p80
      %p83 = scmp.ne.s32.totalorder %s66, %s82
      %p84 = scmp.eq.s32.totalorder %s32, 0
      %p85 = por %p83, %p84
      %s86 = ssub.s32 %s26, %s33
      %p87 = scmp.eq.s32.totalorder %s86, 0
      %s89 = sadd.s32 %s88, 1
      %s90 = scalar_select %p87, %s88, %s89
      %p93 = pneg %p87
      %p94 = scmp.eq.s32.totalorder %s26, 1
      %p95 = por %p93, %p94
      %p96 = scmp.ne.s32.totalorder %s88, %s91
      %p97 = scmp.eq.s32.totalorder %s26, 0
      %p98 = por %p96, %p97
      %p99 = scmp.ne.s32.totalorder %s88, %s91
      %p100 = scmp.eq.s32.totalorder %s31, 1
      %p101 = por %p99, %p100
      %p102 = scmp.ne.s32.totalorder %s91, %s92
      %p103 = scmp.eq.s32.totalorder %s31, 0
      %p104 = por %p102, %p103
      %p105 = scmp.ne.s32.totalorder %s91, %s92
      %p106 = scmp.eq.s32.totalorder %s32, 1
      %p107 = por %p105, %p106
      %p109 = scmp.ne.s32.totalorder %s92, %s108
      %p110 = scmp.eq.s32.totalorder %s32, 0
      %p111 = por %p109, %p110
      %s113 = sadd.s32 %s112, 1
      %p116 = scmp.eq.s32.totalorder %s26, 1
      %p117 = scmp.ne.s32.totalorder %s112, %s114
      %p118 = scmp.eq.s32.totalorder %s26, 0
      %p119 = por %p117, %p118
      %p120 = scmp.ne.s32.totalorder %s112, %s114
      %p121 = scmp.eq.s32.totalorder %s31, 1
      %p122 = por %p120, %p121
      %p123 = scmp.ne.s32.totalorder %s114, %s115
      %p124 = scmp.eq.s32.totalorder %s31, 0
      %p125 = por %p123, %p124
      %p126 = scmp.ne.s32.totalorder %s114, %s115
      %p127 = scmp.eq.s32.totalorder %s32, 1
      %p128 = por %p126, %p127
      %p130 = scmp.ne.s32.totalorder %s115, %s129
      %p131 = scmp.eq.s32.totalorder %s32, 0
      %p132 = por %p130, %p131
      %s134 = sadd.s32 %s133, 1
      %p137 = scmp.eq.s32.totalorder %s26, 1
      %p138 = scmp.ne.s32.totalorder %s133, %s135
      %p139 = scmp.eq.s32.totalorder %s26, 0
      %p140 = por %p138, %p139
      %p141 = scmp.ne.s32.totalorder %s133, %s135
      %p142 = scmp.eq.s32.totalorder %s31, 1
      %p143 = por %p141, %p142
      %p144 = scmp.ne.s32.totalorder %s135, %s136
      %p145 = scmp.eq.s32.totalorder %s31, 0
      %p146 = por %p144, %p145
      %p147 = scmp.ne.s32.totalorder %s135, %s136
      %p148 = scmp.eq.s32.totalorder %s32, 1
      %p149 = por %p147, %p148
      %p151 = scmp.ne.s32.totalorder %s136, %s150
      %p152 = scmp.eq.s32.totalorder %s32, 0
      %p153 = por %p151, %p152
      %s155 = sadd.s32 %s154, 1
      %p158 = scmp.eq.s32.totalorder %s26, 1
      %p159 = scmp.ne.s32.totalorder %s154, %s156
      %p160 = scmp.eq.s32.totalorder %s26, 0
      %p161 = por %p159, %p160
      %p162 = scmp.ne.s32.totalorder %s154, %s156
      %p163 = scmp.eq.s32.totalorder %s31, 1
      %p164 = por %p162, %p163
      %p165 = scmp.ne.s32.totalorder %s156, %s157
      %p166 = scmp.eq.s32.totalorder %s31, 0
      %p167 = por %p165, %p166
      %p168 = scmp.ne.s32.totalorder %s156, %s157
      %p169 = scmp.eq.s32.totalorder %s32, 1
      %p170 = por %p168, %p169
      %p172 = scmp.ne.s32.totalorder %s157, %s171
      %p173 = scmp.eq.s32.totalorder %s32, 0
      %p174 = por %p172, %p173
      %s176 = sadd.s32 %s175, 1
      %p179 = scmp.eq.s32.totalorder %s26, 1
      %p180 = scmp.ne.s32.totalorder %s175, %s177
      %p181 = scmp.eq.s32.totalorder %s26, 0
      %p182 = por %p180, %p181
      %p183 = scmp.ne.s32.totalorder %s175, %s177
      %p184 = scmp.eq.s32.totalorder %s31, 1
      %p185 = por %p183, %p184
      %p186 = scmp.ne.s32.totalorder %s177, %s178
      %p187 = scmp.eq.s32.totalorder %s31, 0
      %p188 = por %p186, %p187
      %p189 = scmp.ne.s32.totalorder %s177, %s178
      %p190 = scmp.eq.s32.totalorder %s32, 1
      %p191 = por %p189, %p190
      %p193 = scmp.ne.s32.totalorder %s178, %s192
      %p194 = scmp.eq.s32.totalorder %s32, 0
      %p195 = por %p193, %p194
      %s197 = sadd.s32 %s196, 1
      %p200 = scmp.eq.s32.totalorder %s26, 1
      %p201 = scmp.ne.s32.totalorder %s196, %s198
      %p202 = scmp.eq.s32.totalorder %s26, 0
      %p203 = por %p201, %p202
      %p204 = scmp.ne.s32.totalorder %s196, %s198
      %p205 = scmp.eq.s32.totalorder %s31, 1
      %p206 = por %p204, %p205
      %p207 = scmp.ne.s32.totalorder %s198, %s199
      %p208 = scmp.eq.s32.totalorder %s31, 0
      %p209 = por %p207, %p208
      %p210 = scmp.ne.s32.totalorder %s198, %s199
      %p211 = scmp.eq.s32.totalorder %s32, 1
      %p212 = por %p210, %p211
      %p214 = scmp.ne.s32.totalorder %s199, %s213
      %p215 = scmp.eq.s32.totalorder %s32, 0
      %p216 = por %p214, %p215
      %s218 = sadd.s32 %s217, 1
      %p221 = scmp.eq.s32.totalorder %s26, 1
      %p222 = scmp.ne.s32.totalorder %s217, %s219
      %p223 = scmp.eq.s32.totalorder %s26, 0
      %p224 = por %p222, %p223
      %p225 = scmp.ne.s32.totalorder %s217, %s219
      %p226 = scmp.eq.s32.totalorder %s31, 1
      %p227 = por %p225, %p226
      %p228 = scmp.ne.s32.totalorder %s219, %s220
      %p229 = scmp.eq.s32.totalorder %s31, 0
      %p230 = por %p228, %p229
      %p231 = scmp.ne.s32.totalorder %s219, %s220
      %p232 = scmp.eq.s32.totalorder %s32, 1
      %p233 = por %p231, %p232
      %p235 = scmp.ne.s32.totalorder %s220, %s234
      %p236 = scmp.eq.s32.totalorder %s32, 0
      %p237 = por %p235, %p236
      %s238 = ssub.s32 %s26, %s33
      %p239 = scmp.eq.s32.totalorder %s238, 0
      %s241 = sadd.s32 %s240, 1
      %s242 = scalar_select %p239, %s240, %s241
      %p245 = pneg %p239
      %p246 = scmp.eq.s32.totalorder %s26, 1
      %p247 = por %p245, %p246
      %p248 = scmp.ne.s32.totalorder %s240, %s243
      %p249 = scmp.eq.s32.totalorder %s26, 0
      %p250 = por %p248, %p249
      %p251 = scmp.ne.s32.totalorder %s240, %s243
      %p252 = scmp.eq.s32.totalorder %s31, 1
      %p253 = por %p251, %p252
      %p254 = scmp.ne.s32.totalorder %s243, %s244
      %p255 = scmp.eq.s32.totalorder %s31, 0
      %p256 = por %p254, %p255
      %p257 = scmp.ne.s32.totalorder %s243, %s244
      %p258 = scmp.eq.s32.totalorder %s32, 1
      %p259 = por %p257, %p258
      %p261 = scmp.ne.s32.totalorder %s244, %s260
      %p262 = scmp.eq.s32.totalorder %s32, 0
      %p263 = por %p261, %p262
      %p264 = scmp.le.s32.totalorder 1, %s26
      %p265 = scmp.lt.s32.totalorder %s26, 3
      %p266 = pnand %p264, %p265
      %p267 = pneg %p266
      // Predicated region
      $region9: #{tpu_custom_call.1} parent=5 // pred_check
        _
      $region10: #{tpu_custom_call.1} parent=5 // pred_check_branch
        %269 = sbr.rel (%p266) target = $region12
      $region11: #{tpu_custom_call.1} parent=5 // pred_region
        %s270 = ssub.s32 %s26, 1
        // Predicated region
        $region13: #{tpu_custom_call.1} parent=11 // pred_check
          %p271 = pneg %p125
        $region14: #{tpu_custom_call.1} parent=11 // pred_check_branch
          %273 = sbr.rel (%p271) target = $region16
        $region15: #{tpu_custom_call.1} parent=11 // pred_region
          %275 = vsyncadd [#allocation9], 0
          %s276 = sshll.u32 %s3, 4
          %s277 = int_to_ptr.hbm [resolvable:$true] %s276
          %s278 = sshll.u32 [#allocation8], 4
          %s279 = int_to_ptr.vmem [resolvable:$true] %s278
          %284 = dma.hbm_to_vmem [thread:$0]  %s277, 1024, %s279, [#allocation9], 64, 64, 4
        $region16: #{tpu_custom_call.1} parent=11 // pred_fallthru
          _
        // Predicated region
        $region17: #{tpu_custom_call.1} parent=11 // pred_check
          %p285 = pneg %p146
        $region18: #{tpu_custom_call.1} parent=11 // pred_check_branch
          %287 = sbr.rel (%p285) target = $region20
        $region19: #{tpu_custom_call.1} parent=11 // pred_region
          _
        $region20: #{tpu_custom_call.1} parent=11 // pred_fallthru
          _
        // Predicated region
        $region21: #{tpu_custom_call.1} parent=11 // pred_check
          %p288 = pneg %p167
        $region22: #{tpu_custom_call.1} parent=11 // pred_check_branch
          %290 = sbr.rel (%p288) target = $region24
        $region23: #{tpu_custom_call.1} parent=11 // pred_region
          %292 = vsyncadd [#allocation9], 0
          %s293 = sshll.u32 %s5, 4
          %s294 = int_to_ptr.hbm [resolvable:$true] %s293
          %s295 = sshll.u32 [#allocation10], 4
          %s296 = int_to_ptr.vmem [resolvable:$true] %s295
          %301 = dma.hbm_to_vmem [thread:$0]  %s294, 1024, %s296, [#allocation9], 64, 64, 4
        $region24: #{tpu_custom_call.1} parent=11 // pred_fallthru
          _
        // Predicated region
        $region25: #{tpu_custom_call.1} parent=11 // pred_check
          %p302 = pneg %p188
        $region26: #{tpu_custom_call.1} parent=11 // pred_check_branch
          %304 = sbr.rel (%p302) target = $region28
        $region27: #{tpu_custom_call.1} parent=11 // pred_region
          %306 = vsyncadd [#allocation12], 0
          %s307 = sshll.u32 %s6, 4
          %s308 = int_to_ptr.hbm [resolvable:$true] %s307
          %s309 = sshll.u32 [#allocation11], 4
          %s310 = int_to_ptr.vmem [resolvable:$true] %s309
          %315 = dma.hbm_to_vmem [thread:$0]  %s308, 1024, %s310, [#allocation12], 64, 64, 4
        $region28: #{tpu_custom_call.1} parent=11 // pred_fallthru
          _
        // Predicated region
        $region29: #{tpu_custom_call.1} parent=11 // pred_check
          %p316 = pneg %p209
        $region30: #{tpu_custom_call.1} parent=11 // pred_check_branch
          %318 = sbr.rel (%p316) target = $region32
        $region31: #{tpu_custom_call.1} parent=11 // pred_region
          %320 = vsyncadd [#allocation12], 0
          %s321 = sshll.u32 %s7, 4
          %s322 = int_to_ptr.hbm [resolvable:$true] %s321
          %s323 = sshll.u32 [#allocation13], 4
          %s324 = int_to_ptr.vmem [resolvable:$true] %s323
          %329 = dma.hbm_to_vmem [thread:$0]  %s322, 2048, %s324, [#allocation12], 128, 128, 8
        $region32: #{tpu_custom_call.1} parent=11 // pred_fallthru
          _
        // Predicated region
        $region33: #{tpu_custom_call.1} parent=11 // pred_check
          %p330 = pneg %p230
        $region34: #{tpu_custom_call.1} parent=11 // pred_check_branch
          %332 = sbr.rel (%p330) target = $region36
        $region35: #{tpu_custom_call.1} parent=11 // pred_region
          _
        $region36: #{tpu_custom_call.1} parent=11 // pred_fallthru
          _
      $region12: #{tpu_custom_call.1} parent=5 // pred_fallthru
        _
      %p333 = scmp.lt.s32.totalorder %s26, 2
      // Predicated region
      $region37: #{tpu_custom_call.1} parent=5 // pred_check
        %p334 = pneg %p333
      $region38: #{tpu_custom_call.1} parent=5 // pred_check_branch
        %336 = sbr.rel (%p334) target = $region40
      $region39: #{tpu_custom_call.1} parent=5 // pred_region
        // Predicated region
        $region41: #{tpu_custom_call.1} parent=39 // pred_check
          %p337 = pneg %p46
        $region42: #{tpu_custom_call.1} parent=39 // pred_check_branch
          %339 = sbr.rel (%p337) target = $region44
        $region43: #{tpu_custom_call.1} parent=39 // pred_region
          %s340 = sand.u32 %s36, 1
          %s341 = scalar_lea.sflag [#allocation3], %s340
          %s342 = sand.u32 %s36, 1
          %s343 = smul.addr %s342, 64
          %s344 = scalar_lea.vmem [#allocation2], %s343
          %s345 = smul.u32 8, %s26
          %347 = vsyncadd %s341, 0
          %s348 = smul.addr %s345, 2
          %s349 = smul.addr %s348, 4
          %s350 = scalar_lea.hbm %s0, %s349
          %s351 = sshll.u32 %s350, 4
          %s352 = int_to_ptr.hbm [resolvable:$true] %s351
          %s353 = sshll.u32 %s344, 4
          %s354 = int_to_ptr.vmem [resolvable:$true] %s353
          %359 = dma.hbm_to_vmem [thread:$0]  %s352, 1024, %s354, %s341, 64, 64, 4
        $region44: #{tpu_custom_call.1} parent=39 // pred_fallthru
          _
        // Predicated region
        $region45: #{tpu_custom_call.1} parent=39 // pred_check
          %p360 = pneg %p72
        $region46: #{tpu_custom_call.1} parent=39 // pred_check_branch
          %362 = sbr.rel (%p360) target = $region48
        $region47: #{tpu_custom_call.1} parent=39 // pred_region
          %s363 = sand.u32 %s26, 1
          %s364 = scalar_lea.sflag [#allocation6], %s363
          %s365 = sand.u32 %s62, 1
          %s366 = smul.addr %s365, 64
          %s367 = scalar_lea.vmem [#allocation5], %s366
          %s368 = smul.u32 8, %s26
          %370 = vsyncadd %s364, 0
          %s371 = smul.addr %s368, 2
          %s372 = smul.addr %s371, 4
          %s373 = scalar_lea.hbm %s1, %s372
          %s374 = sshll.u32 %s373, 4
          %s375 = int_to_ptr.hbm [resolvable:$true] %s374
          %s376 = sshll.u32 %s367, 4
          %s377 = int_to_ptr.vmem [resolvable:$true] %s376
          %382 = dma.hbm_to_vmem [thread:$0]  %s375, 1024, %s377, %s364, 64, 64, 4
        $region48: #{tpu_custom_call.1} parent=39 // pred_fallthru
          _
        // Predicated region
        $region49: #{tpu_custom_call.1} parent=39 // pred_check
          %p383 = pneg %p98
        $region50: #{tpu_custom_call.1} parent=39 // pred_check_branch
          %385 = sbr.rel (%p383) target = $region52
        $region51: #{tpu_custom_call.1} parent=39 // pred_region
          %s386 = sand.u32 %s26, 1
          %s387 = scalar_lea.sflag [#allocation6], %s386
          %s388 = sand.u32 %s88, 1
          %s389 = smul.addr %s388, 8
          %s390 = scalar_lea.vmem [#allocation7], %s389
          %392 = vsyncadd %s387, 0
          %s393 = smul.addr %s26, 8
          %s394 = scalar_lea.hbm %s2, %s393
          %s396 = sshll.u32 %s394, 4
          %s397 = int_to_ptr.hbm [resolvable:$true] %s396
          %s398 = sshll.u32 %s390, 4
          %s399 = int_to_ptr.vmem [resolvable:$true] %s398
          %401 = dma.hbm_to_vmem [thread:$0]  %s397, 128, %s399, %s387
        $region52: #{tpu_custom_call.1} parent=39 // pred_fallthru
          _
      $region40: #{tpu_custom_call.1} parent=5 // pred_fallthru
        _
      %p402 = scmp.le.s32.totalorder 1, %s26
      %p403 = scmp.lt.s32.totalorder %s26, 3
      %p404 = pnand %p402, %p403
      %p405 = pneg %p404
      // Predicated region
      $region53: #{tpu_custom_call.1} parent=5 // pred_check
        _
      $region54: #{tpu_custom_call.1} parent=5 // pred_check_branch
        %407 = sbr.rel (%p404) target = $region56
      $region55: #{tpu_custom_call.1} parent=5 // pred_region
        %s408 = ssub.s32 %s26, 1
        %s409 = sand.u32 %s39, 1
        %s410 = scalar_lea.sflag [#allocation3], %s409
        %s411 = sand.u32 %s39, 1
        %s412 = smul.addr %s411, 64
        %s413 = scalar_lea.vmem [#allocation2], %s412
        // Predicated region
        $region57: #{tpu_custom_call.1} parent=55 // pred_check
          %p414 = pneg %p52
        $region58: #{tpu_custom_call.1} parent=55 // pred_check_branch
          %416 = sbr.rel (%p414) target = $region60
        $region59: #{tpu_custom_call.1} parent=55 // pred_region
          %418 = dma.done %s410, 1024
        $region60: #{tpu_custom_call.1} parent=55 // pred_fallthru
          _
        %s419 = sand.u32 %s31, 1
        %s420 = scalar_lea.sflag [#allocation6], %s419
        %s421 = sand.u32 %s65, 1
        %s422 = smul.addr %s421, 64
        %s423 = scalar_lea.vmem [#allocation5], %s422
        // Predicated region
        $region61: #{tpu_custom_call.1} parent=55 // pred_check
          %p424 = pneg %p78
        $region62: #{tpu_custom_call.1} parent=55 // pred_check_branch
          %426 = sbr.rel (%p424) target = $region64
        $region63: #{tpu_custom_call.1} parent=55 // pred_region
          %428 = dma.done %s420, 1024
        $region64: #{tpu_custom_call.1} parent=55 // pred_fallthru
          _
        %s429 = sand.u32 %s31, 1
        %s430 = scalar_lea.sflag [#allocation6], %s429
        %s431 = sand.u32 %s91, 1
        %s432 = smul.addr %s431, 8
        %s433 = scalar_lea.vmem [#allocation7], %s432
        // Predicated region
        $region65: #{tpu_custom_call.1} parent=55 // pred_check
          %p434 = pneg %p104
        $region66: #{tpu_custom_call.1} parent=55 // pred_check_branch
          %436 = sbr.rel (%p434) target = $region68
        $region67: #{tpu_custom_call.1} parent=55 // pred_region
          %438 = dma.done %s430, 128
        $region68: #{tpu_custom_call.1} parent=55 // pred_fallthru
          _
        // Predicated region
        $region69: #{tpu_custom_call.1} parent=55 // pred_check
          %p439 = pneg %p125
        $region70: #{tpu_custom_call.1} parent=55 // pred_check_branch
          %441 = sbr.rel (%p439) target = $region72
        $region71: #{tpu_custom_call.1} parent=55 // pred_region
          %443 = dma.done [#allocation9], 1024
        $region72: #{tpu_custom_call.1} parent=55 // pred_fallthru
          _
        // Predicated region
        $region73: #{tpu_custom_call.1} parent=55 // pred_check
          %p444 = pneg %p167
        $region74: #{tpu_custom_call.1} parent=55 // pred_check_branch
          %446 = sbr.rel (%p444) target = $region76
        $region75: #{tpu_custom_call.1} parent=55 // pred_region
          %448 = dma.done [#allocation9], 1024
        $region76: #{tpu_custom_call.1} parent=55 // pred_fallthru
          _
        // Predicated region
        $region77: #{tpu_custom_call.1} parent=55 // pred_check
          %p449 = pneg %p188
        $region78: #{tpu_custom_call.1} parent=55 // pred_check_branch
          %451 = sbr.rel (%p449) target = $region80
        $region79: #{tpu_custom_call.1} parent=55 // pred_region
          %453 = dma.done [#allocation12], 1024
        $region80: #{tpu_custom_call.1} parent=55 // pred_fallthru
          _
        // Predicated region
        $region81: #{tpu_custom_call.1} parent=55 // pred_check
          %p454 = pneg %p209
        $region82: #{tpu_custom_call.1} parent=55 // pred_check_branch
          %456 = sbr.rel (%p454) target = $region84
        $region83: #{tpu_custom_call.1} parent=55 // pred_region
          %458 = dma.done [#allocation12], 2048
        $region84: #{tpu_custom_call.1} parent=55 // pred_fallthru
          _
        %s459 = sand.u32 %s39, 1
        %s460 = scalar_lea.sflag [#allocation3], %s459
        %s461 = sand.u32 %s39, 1
        %s462 = smul.addr %s461, 64
        %s463 = scalar_lea.vmem [#allocation2], %s462
        %p464 = pneg %p52
        %p465 = pneg %p49
        %s466 = sand.u32 %s31, 1
        %s467 = scalar_lea.sflag [#allocation6], %s466
        %s468 = sand.u32 %s65, 1
        %s469 = smul.addr %s468, 64
        %s470 = scalar_lea.vmem [#allocation5], %s469
        %p471 = pneg %p78
        %p472 = pneg %p75
        %s473 = sand.u32 %s31, 1
        %s474 = scalar_lea.sflag [#allocation6], %s473
        %s475 = sand.u32 %s91, 1
        %s476 = smul.addr %s475, 8
        %s477 = scalar_lea.vmem [#allocation7], %s476
        %p478 = pneg %p104
        %p479 = pneg %p101
        %p480 = pneg %p125
        %p481 = pneg %p122
        %p482 = pneg %p146
        %p483 = pneg %p143
        %p484 = pneg %p167
        %p485 = pneg %p164
        %p486 = pneg %p188
        %p487 = pneg %p185
        %p488 = pneg %p209
        %p489 = pneg %p206
        %p490 = pneg %p230
        %p491 = pneg %p227
        %p492 = pneg %p256
        %p493 = pneg %p253
        %s494 = sand.u32 %s243, 1
        %s495 = scalar_lea.sflag [#allocation4], %s494
        %s496 = sand.u32 %s243, 1
        %s497 = smul.addr %s496, 256
        %s498 = scalar_lea.vmem [#allocation14], %s497
        %s499 = smul.u32 8, %s31
        %s500 = smul.u32 8, %s31
        %s501 = smul.u32 8, %s31
        %v503 = vld [vmem:[%s413] sm:$0xf]
        %v504 = vld [vmem:[%s413 + $0x4] sm:$0xf]
        %v505 = vld [vmem:[%s413 + $0x8] sm:$0xf]
        %v506 = vld [vmem:[%s413 + $0xc] sm:$0xf]
        %v507 = vld [vmem:[%s413 + $0x10] sm:$0xf]
        %v508 = vld [vmem:[%s413 + $0x14] sm:$0xf]
        %v509 = vld [vmem:[%s413 + $0x18] sm:$0xf]
        %v510 = vld [vmem:[%s413 + $0x1c] sm:$0xf]
        %v511 = vld [vmem:[%s413 + $0x20] sm:$0xf]
        %v512 = vld [vmem:[%s413 + $0x24] sm:$0xf]
        %v513 = vld [vmem:[%s413 + $0x28] sm:$0xf]
        %v514 = vld [vmem:[%s413 + $0x2c] sm:$0xf]
        %v515 = vld [vmem:[%s413 + $0x30] sm:$0xf]
        %v516 = vld [vmem:[%s413 + $0x34] sm:$0xf]
        %v517 = vld [vmem:[%s413 + $0x38] sm:$0xf]
        %v518 = vld [vmem:[%s413 + $0x3c] sm:$0xf]
        %v519 = vld [vmem:[%s423] sm:$0xf]
        %v520 = vld [vmem:[%s423 + $0x4] sm:$0xf]
        %v521 = vld [vmem:[%s423 + $0x8] sm:$0xf]
        %v522 = vld [vmem:[%s423 + $0xc] sm:$0xf]
        %v523 = vld [vmem:[%s423 + $0x10] sm:$0xf]
        %v524 = vld [vmem:[%s423 + $0x14] sm:$0xf]
        %v525 = vld [vmem:[%s423 + $0x18] sm:$0xf]
        %v526 = vld [vmem:[%s423 + $0x1c] sm:$0xf]
        %v527 = vld [vmem:[%s423 + $0x20] sm:$0xf]
        %v528 = vld [vmem:[%s423 + $0x24] sm:$0xf]
        %v529 = vld [vmem:[%s423 + $0x28] sm:$0xf]
        %v530 = vld [vmem:[%s423 + $0x2c] sm:$0xf]
        %v531 = vld [vmem:[%s423 + $0x30] sm:$0xf]
        %v532 = vld [vmem:[%s423 + $0x34] sm:$0xf]
        %v533 = vld [vmem:[%s423 + $0x38] sm:$0xf]
        %v534 = vld [vmem:[%s423 + $0x3c] sm:$0xf]
        %v535 = vld [vmem:[#allocation8] sm:$0xf]
        %v536 = vld [vmem:[#allocation8 + $0x4] sm:$0xf]
        %v537 = vld [vmem:[#allocation8 + $0x8] sm:$0xf]
        %v538 = vld [vmem:[#allocation8 + $0xc] sm:$0xf]
        %v539 = vld [vmem:[#allocation8 + $0x10] sm:$0xf]
        %v540 = vld [vmem:[#allocation8 + $0x14] sm:$0xf]
        %v541 = vld [vmem:[#allocation8 + $0x18] sm:$0xf]
        %v542 = vld [vmem:[#allocation8 + $0x1c] sm:$0xf]
        %v543 = vld [vmem:[#allocation8 + $0x20] sm:$0xf]
        %v544 = vld [vmem:[#allocation8 + $0x24] sm:$0xf]
        %v545 = vld [vmem:[#allocation8 + $0x28] sm:$0xf]
        %v546 = vld [vmem:[#allocation8 + $0x2c] sm:$0xf]
        %v547 = vld [vmem:[#allocation8 + $0x30] sm:$0xf]
        %v548 = vld [vmem:[#allocation8 + $0x34] sm:$0xf]
        %v549 = vld [vmem:[#allocation8 + $0x38] sm:$0xf]
        %v550 = vld [vmem:[#allocation8 + $0x3c] sm:$0xf]
        %v551 = vld [vmem:[%s4] sm:$0x1]
        %v553 = vperm.slane %v551, 0
        %v571 = vunpack.c.l.b16 %v503
        %v572 = vunpack.c.l.b16 %v504
        %v573 = vunpack.c.l.b16 %v505
        %v574 = vunpack.c.l.b16 %v506
        %v575 = vunpack.c.l.b16 %v507
        %v576 = vunpack.c.l.b16 %v508
        %v577 = vunpack.c.l.b16 %v509
        %v578 = vunpack.c.l.b16 %v510
        %v579 = vunpack.c.l.b16 %v511
        %v580 = vunpack.c.l.b16 %v512
        %v581 = vunpack.c.l.b16 %v513
        %v582 = vunpack.c.l.b16 %v514
        %v583 = vunpack.c.l.b16 %v515
        %v584 = vunpack.c.l.b16 %v516
        %v585 = vunpack.c.l.b16 %v517
        %v586 = vunpack.c.l.b16 %v518
        %v587 = vpack.c.b16 %v572, %v571
        %v588 = vpack.c.b16 %v574, %v573
        %v589 = vpack.c.b16 %v576, %v575
        %v590 = vpack.c.b16 %v578, %v577
        %v591 = vpack.c.b16 %v580, %v579
        %v592 = vpack.c.b16 %v582, %v581
        %v593 = vpack.c.b16 %v584, %v583
        %v594 = vpack.c.b16 %v586, %v585
        %v619 = vunpack.c.l.b16 %v535
        %v620 = vunpack.c.l.b16 %v536
        %v621 = vunpack.c.l.b16 %v537
        %v622 = vunpack.c.l.b16 %v538
        %v623 = vunpack.c.l.b16 %v539
        %v624 = vunpack.c.l.b16 %v540
        %v625 = vunpack.c.l.b16 %v541
        %v626 = vunpack.c.l.b16 %v542
        %v627 = vunpack.c.l.b16 %v543
        %v628 = vunpack.c.l.b16 %v544
        %v629 = vunpack.c.l.b16 %v545
        %v630 = vunpack.c.l.b16 %v546
        %v631 = vunpack.c.l.b16 %v547
        %v632 = vunpack.c.l.b16 %v548
        %v633 = vunpack.c.l.b16 %v549
        %v634 = vunpack.c.l.b16 %v550
        %v635 = vpack.c.b16 %v620, %v619
        %v636 = vpack.c.b16 %v622, %v621
        %v637 = vpack.c.b16 %v624, %v623
        %v638 = vpack.c.b16 %v626, %v625
        %v639 = vpack.c.b16 %v628, %v627
        %v640 = vpack.c.b16 %v630, %v629
        %v641 = vpack.c.b16 %v632, %v631
        %v642 = vpack.c.b16 %v634, %v633
        %651 = vmatpush.bf16.msra.mxu0 %v642
        %652 = vmatpush.bf16.msra.mxu0 %v641
        %653 = vmatpush.bf16.msra.mxu0 %v640
        %654 = vmatpush.bf16.msra.mxu0 %v639
        %655 = vmatpush.bf16.msra.mxu0 %v638
        %656 = vmatpush.bf16.msra.mxu0 %v637
        %657 = vmatpush.bf16.msra.mxu0 %v636
        %658 = vmatpush.bf16.msra.mxu0 %v635
        %659 = vmatmul.bf16.gmra.mxu0 %v587
        %v660 = vpop.f32.mrf.mxu0
        %v661 = vadd.f32 %v553, %v660
        %v662 = vpop.f32.mrf.mxu0
        %v663 = vadd.f32 %v553, %v662
        %664 = vmatmul.bf16.gmra.mxu0 %v588
        %v665 = vpop.f32.mrf.mxu0
        %v666 = vadd.f32 %v553, %v665
        %v667 = vpop.f32.mrf.mxu0
        %v668 = vadd.f32 %v553, %v667
        %669 = vmatmul.bf16.gmra.mxu0 %v589
        %v670 = vpop.f32.mrf.mxu0
        %v671 = vadd.f32 %v553, %v670
        %v672 = vpop.f32.mrf.mxu0
        %v673 = vadd.f32 %v553, %v672
        %674 = vmatmul.bf16.gmra.mxu0 %v590
        %v675 = vpop.f32.mrf.mxu0
        %v676 = vadd.f32 %v553, %v675
        %v677 = vpop.f32.mrf.mxu0
        %v678 = vadd.f32 %v553, %v677
        %679 = vmatmul.bf16.gmra.mxu0 %v591
        %v680 = vpop.f32.mrf.mxu0
        %v681 = vadd.f32 %v553, %v680
        %v682 = vpop.f32.mrf.mxu0
        %v683 = vadd.f32 %v553, %v682
        %684 = vmatmul.bf16.gmra.mxu0 %v592
        %v685 = vpop.f32.mrf.mxu0
        %v686 = vadd.f32 %v553, %v685
        %v687 = vpop.f32.mrf.mxu0
        %v688 = vadd.f32 %v553, %v687
        %689 = vmatmul.bf16.gmra.mxu0 %v593
        %v690 = vpop.f32.mrf.mxu0
        %v691 = vadd.f32 %v553, %v690
        %v692 = vpop.f32.mrf.mxu0
        %v693 = vadd.f32 %v553, %v692
        %694 = vmatmul.bf16.gmra.mxu0 %v594
        %v695 = vpop.f32.mrf.mxu0
        %v696 = vadd.f32 %v553, %v695
        %v697 = vpop.f32.mrf.mxu0
        %v698 = vadd.f32 %v553, %v697
        %699 = vdwg.mxu0
        %v700 = vmax.f32 %v661, 0.0
        %v701 = vmax.f32 %v663, 0.0
        %v702 = vmax.f32 %v666, 0.0
        %v703 = vmax.f32 %v668, 0.0
        %v704 = vmax.f32 %v671, 0.0
        %v705 = vmax.f32 %v673, 0.0
        %v706 = vmax.f32 %v676, 0.0
        %v707 = vmax.f32 %v678, 0.0
        %v708 = vmax.f32 %v681, 0.0
        %v709 = vmax.f32 %v683, 0.0
        %v710 = vmax.f32 %v686, 0.0
        %v711 = vmax.f32 %v688, 0.0
        %v712 = vmax.f32 %v691, 0.0
        %v713 = vmax.f32 %v693, 0.0
        %v714 = vmax.f32 %v696, 0.0
        %v715 = vmax.f32 %v698, 0.0
        %v716 = vld [vmem:[#allocation10] sm:$0xf]
        %v717 = vld [vmem:[#allocation10 + $0x4] sm:$0xf]
        %v718 = vld [vmem:[#allocation10 + $0x8] sm:$0xf]
        %v719 = vld [vmem:[#allocation10 + $0xc] sm:$0xf]
        %v720 = vld [vmem:[#allocation10 + $0x10] sm:$0xf]
        %v721 = vld [vmem:[#allocation10 + $0x14] sm:$0xf]
        %v722 = vld [vmem:[#allocation10 + $0x18] sm:$0xf]
        %v723 = vld [vmem:[#allocation10 + $0x1c] sm:$0xf]
        %v724 = vld [vmem:[#allocation10 + $0x20] sm:$0xf]
        %v725 = vld [vmem:[#allocation10 + $0x24] sm:$0xf]
        %v726 = vld [vmem:[#allocation10 + $0x28] sm:$0xf]
        %v727 = vld [vmem:[#allocation10 + $0x2c] sm:$0xf]
        %v728 = vld [vmem:[#allocation10 + $0x30] sm:$0xf]
        %v729 = vld [vmem:[#allocation10 + $0x34] sm:$0xf]
        %v730 = vld [vmem:[#allocation10 + $0x38] sm:$0xf]
        %v731 = vld [vmem:[#allocation10 + $0x3c] sm:$0xf]
        %v748 = vunpack.c.l.b16 %v519
        %v749 = vunpack.c.l.b16 %v520
        %v750 = vunpack.c.l.b16 %v521
        %v751 = vunpack.c.l.b16 %v522
        %v752 = vunpack.c.l.b16 %v523
        %v753 = vunpack.c.l.b16 %v524
        %v754 = vunpack.c.l.b16 %v525
        %v755 = vunpack.c.l.b16 %v526
        %v756 = vunpack.c.l.b16 %v527
        %v757 = vunpack.c.l.b16 %v528
        %v758 = vunpack.c.l.b16 %v529
        %v759 = vunpack.c.l.b16 %v530
        %v760 = vunpack.c.l.b16 %v531
        %v761 = vunpack.c.l.b16 %v532
        %v762 = vunpack.c.l.b16 %v533
        %v763 = vunpack.c.l.b16 %v534
        %v764 = vpack.c.b16 %v749, %v748
        %v765 = vpack.c.b16 %v751, %v750
        %v766 = vpack.c.b16 %v753, %v752
        %v767 = vpack.c.b16 %v755, %v754
        %v768 = vpack.c.b16 %v757, %v756
        %v769 = vpack.c.b16 %v759, %v758
        %v770 = vpack.c.b16 %v761, %v760
        %v771 = vpack.c.b16 %v763, %v762
        %v796 = vunpack.c.l.b16 %v716
        %v797 = vunpack.c.l.b16 %v717
        %v798 = vunpack.c.l.b16 %v718
        %v799 = vunpack.c.l.b16 %v719
        %v800 = vunpack.c.l.b16 %v720
        %v801 = vunpack.c.l.b16 %v721
        %v802 = vunpack.c.l.b16 %v722
        %v803 = vunpack.c.l.b16 %v723
        %v804 = vunpack.c.l.b16 %v724
        %v805 = vunpack.c.l.b16 %v725
        %v806 = vunpack.c.l.b16 %v726
        %v807 = vunpack.c.l.b16 %v727
        %v808 = vunpack.c.l.b16 %v728
        %v809 = vunpack.c.l.b16 %v729
        %v810 = vunpack.c.l.b16 %v730
        %v811 = vunpack.c.l.b16 %v731
        %v812 = vpack.c.b16 %v797, %v796
        %v813 = vpack.c.b16 %v799, %v798
        %v814 = vpack.c.b16 %v801, %v800
        %v815 = vpack.c.b16 %v803, %v802
        %v816 = vpack.c.b16 %v805, %v804
        %v817 = vpack.c.b16 %v807, %v806
        %v818 = vpack.c.b16 %v809, %v808
        %v819 = vpack.c.b16 %v811, %v810
        %828 = vmatpush.bf16.msra.mxu0 %v819
        %829 = vmatpush.bf16.msra.mxu0 %v818
        %830 = vmatpush.bf16.msra.mxu0 %v817
        %831 = vmatpush.bf16.msra.mxu0 %v816
        %832 = vmatpush.bf16.msra.mxu0 %v815
        %833 = vmatpush.bf16.msra.mxu0 %v814
        %834 = vmatpush.bf16.msra.mxu0 %v813
        %835 = vmatpush.bf16.msra.mxu0 %v812
        %836 = vmatmul.bf16.gmra.mxu0 %v764
        %v837 = vpop.f32.mrf.mxu0
        %v838 = vadd.f32 0.0, %v837
        %v839 = vpop.f32.mrf.mxu0
        %v840 = vadd.f32 0.0, %v839
        %841 = vmatmul.bf16.gmra.mxu0 %v765
        %v842 = vpop.f32.mrf.mxu0
        %v843 = vadd.f32 0.0, %v842
        %v844 = vpop.f32.mrf.mxu0
        %v845 = vadd.f32 0.0, %v844
        %846 = vmatmul.bf16.gmra.mxu0 %v766
        %v847 = vpop.f32.mrf.mxu0
        %v848 = vadd.f32 0.0, %v847
        %v849 = vpop.f32.mrf.mxu0
        %v850 = vadd.f32 0.0, %v849
        %851 = vmatmul.bf16.gmra.mxu0 %v767
        %v852 = vpop.f32.mrf.mxu0
        %v853 = vadd.f32 0.0, %v852
        %v854 = vpop.f32.mrf.mxu0
        %v855 = vadd.f32 0.0, %v854
        %856 = vmatmul.bf16.gmra.mxu0 %v768
        %v857 = vpop.f32.mrf.mxu0
        %v858 = vadd.f32 0.0, %v857
        %v859 = vpop.f32.mrf.mxu0
        %v860 = vadd.f32 0.0, %v859
        %861 = vmatmul.bf16.gmra.mxu0 %v769
        %v862 = vpop.f32.mrf.mxu0
        %v863 = vadd.f32 0.0, %v862
        %v864 = vpop.f32.mrf.mxu0
        %v865 = vadd.f32 0.0, %v864
        %866 = vmatmul.bf16.gmra.mxu0 %v770
        %v867 = vpop.f32.mrf.mxu0
        %v868 = vadd.f32 0.0, %v867
        %v869 = vpop.f32.mrf.mxu0
        %v870 = vadd.f32 0.0, %v869
        %871 = vmatmul.bf16.gmra.mxu0 %v771
        %v872 = vpop.f32.mrf.mxu0
        %v873 = vadd.f32 0.0, %v872
        %v874 = vpop.f32.mrf.mxu0
        %v875 = vadd.f32 0.0, %v874
        %876 = vdwg.mxu0
        %v877 = vpack.c.bf16 %v700, %v700
        %v878 = vpack.c.bf16 %v701, %v701
        %v879 = vpack.c.bf16 %v702, %v702
        %v880 = vpack.c.bf16 %v703, %v703
        %v881 = vpack.c.bf16 %v704, %v704
        %v882 = vpack.c.bf16 %v705, %v705
        %v883 = vpack.c.bf16 %v706, %v706
        %v884 = vpack.c.bf16 %v707, %v707
        %v885 = vpack.c.bf16 %v708, %v708
        %v886 = vpack.c.bf16 %v709, %v709
        %v887 = vpack.c.bf16 %v710, %v710
        %v888 = vpack.c.bf16 %v711, %v711
        %v889 = vpack.c.bf16 %v712, %v712
        %v890 = vpack.c.bf16 %v713, %v713
        %v891 = vpack.c.bf16 %v714, %v714
        %v892 = vpack.c.bf16 %v715, %v715
        %v893 = vpack.c.bf16 %v838, %v838
        %v894 = vpack.c.bf16 %v840, %v840
        %v895 = vpack.c.bf16 %v843, %v843
        %v896 = vpack.c.bf16 %v845, %v845
        %v897 = vpack.c.bf16 %v848, %v848
        %v898 = vpack.c.bf16 %v850, %v850
        %v899 = vpack.c.bf16 %v853, %v853
        %v900 = vpack.c.bf16 %v855, %v855
        %v901 = vpack.c.bf16 %v858, %v858
        %v902 = vpack.c.bf16 %v860, %v860
        %v903 = vpack.c.bf16 %v863, %v863
        %v904 = vpack.c.bf16 %v865, %v865
        %v905 = vpack.c.bf16 %v868, %v868
        %v906 = vpack.c.bf16 %v870, %v870
        %v907 = vpack.c.bf16 %v873, %v873
        %v908 = vpack.c.bf16 %v875, %v875
        %v911 = vunpack.c.l.b16 %v893
        %v912 = vunpack.c.l.b16 %v894
        %v913 = vpack.c.b16 %v912, %v911
        %v917 = vunpack.c.l.b16 %v877
        %v918 = vunpack.c.l.b16 %v878
        %v919 = vpack.c.b16 %v918, %v917
        %921 = vmatpush.bf16.xpose.msra.mxu0 0
        %922 = vmatpush.bf16.xpose.msra.mxu0 0
        %923 = vmatpush.bf16.xpose.msra.mxu0 0
        %924 = vmatpush.bf16.xpose.msra.mxu0 0
        %925 = vmatpush.bf16.xpose.msra.mxu0 0
        %926 = vmatpush.bf16.xpose.msra.mxu0 0
        %927 = vmatpush.bf16.xpose.msra.mxu0 0
        %928 = vmatpush.bf16.xpose.msra.mxu0 %v919
        %929 = vmatmul.bf16.gmra.mxu0 %v913
        %v930 = vpop.f32.mrf.mxu0
        %v931 = vadd.f32 0.0, %v930
        %v932 = vpop.f32.mrf.mxu0
        %v933 = vadd.f32 0.0, %v932
        %934 = vdwg.mxu0
        %v937 = vunpack.c.l.b16 %v895
        %v938 = vunpack.c.l.b16 %v896
        %v939 = vpack.c.b16 %v938, %v937
        %v943 = vunpack.c.l.b16 %v879
        %v944 = vunpack.c.l.b16 %v880
        %v945 = vpack.c.b16 %v944, %v943
        %947 = vmatpush.bf16.xpose.msra.mxu0 0
        %948 = vmatpush.bf16.xpose.msra.mxu0 0
        %949 = vmatpush.bf16.xpose.msra.mxu0 0
        %950 = vmatpush.bf16.xpose.msra.mxu0 0
        %951 = vmatpush.bf16.xpose.msra.mxu0 0
        %952 = vmatpush.bf16.xpose.msra.mxu0 0
        %953 = vmatpush.bf16.xpose.msra.mxu0 0
        %954 = vmatpush.bf16.xpose.msra.mxu0 %v945
        %955 = vmatmul.bf16.gmra.mxu0 %v939
        %v956 = vpop.f32.mrf.mxu0
        %v957 = vadd.f32 0.0, %v956
        %v958 = vpop.f32.mrf.mxu0
        %v959 = vadd.f32 0.0, %v958
        %960 = vdwg.mxu0
        %v963 = vunpack.c.l.b16 %v897
        %v964 = vunpack.c.l.b16 %v898
        %v965 = vpack.c.b16 %v964, %v963
        %v969 = vunpack.c.l.b16 %v881
        %v970 = vunpack.c.l.b16 %v882
        %v971 = vpack.c.b16 %v970, %v969
        %973 = vmatpush.bf16.xpose.msra.mxu0 0
        %974 = vmatpush.bf16.xpose.msra.mxu0 0
        %975 = vmatpush.bf16.xpose.msra.mxu0 0
        %976 = vmatpush.bf16.xpose.msra.mxu0 0
        %977 = vmatpush.bf16.xpose.msra.mxu0 0
        %978 = vmatpush.bf16.xpose.msra.mxu0 0
        %979 = vmatpush.bf16.xpose.msra.mxu0 0
        %980 = vmatpush.bf16.xpose.msra.mxu0 %v971
        %981 = vmatmul.bf16.gmra.mxu0 %v965
        %v982 = vpop.f32.mrf.mxu0
        %v983 = vadd.f32 0.0, %v982
        %v984 = vpop.f32.mrf.mxu0
        %v985 = vadd.f32 0.0, %v984
        %986 = vdwg.mxu0
        %v989 = vunpack.c.l.b16 %v899
        %v990 = vunpack.c.l.b16 %v900
        %v991 = vpack.c.b16 %v990, %v989
        %v995 = vunpack.c.l.b16 %v883
        %v996 = vunpack.c.l.b16 %v884
        %v997 = vpack.c.b16 %v996, %v995
        %999 = vmatpush.bf16.xpose.msra.mxu0 0
        %1000 = vmatpush.bf16.xpose.msra.mxu0 0
        %1001 = vmatpush.bf16.xpose.msra.mxu0 0
        %1002 = vmatpush.bf16.xpose.msra.mxu0 0
        %1003 = vmatpush.bf16.xpose.msra.mxu0 0
        %1004 = vmatpush.bf16.xpose.msra.mxu0 0
        %1005 = vmatpush.bf16.xpose.msra.mxu0 0
        %1006 = vmatpush.bf16.xpose.msra.mxu0 %v997
        %1007 = vmatmul.bf16.gmra.mxu0 %v991
        %v1008 = vpop.f32.mrf.mxu0
        %v1009 = vadd.f32 0.0, %v1008
        %v1010 = vpop.f32.mrf.mxu0
        %v1011 = vadd.f32 0.0, %v1010
        %1012 = vdwg.mxu0
        %v1015 = vunpack.c.l.b16 %v901
        %v1016 = vunpack.c.l.b16 %v902
        %v1017 = vpack.c.b16 %v1016, %v1015
        %v1021 = vunpack.c.l.b16 %v885
        %v1022 = vunpack.c.l.b16 %v886
        %v1023 = vpack.c.b16 %v1022, %v1021
        %1025 = vmatpush.bf16.xpose.msra.mxu0 0
        %1026 = vmatpush.bf16.xpose.msra.mxu0 0
        %1027 = vmatpush.bf16.xpose.msra.mxu0 0
        %1028 = vmatpush.bf16.xpose.msra.mxu0 0
        %1029 = vmatpush.bf16.xpose.msra.mxu0 0
        %1030 = vmatpush.bf16.xpose.msra.mxu0 0
        %1031 = vmatpush.bf16.xpose.msra.mxu0 0
        %1032 = vmatpush.bf16.xpose.msra.mxu0 %v1023
        %1033 = vmatmul.bf16.gmra.mxu0 %v1017
        %v1034 = vpop.f32.mrf.mxu0
        %v1035 = vadd.f32 0.0, %v1034
        %v1036 = vpop.f32.mrf.mxu0
        %v1037 = vadd.f32 0.0, %v1036
        %1038 = vdwg.mxu0
        %v1041 = vunpack.c.l.b16 %v903
        %v1042 = vunpack.c.l.b16 %v904
        %v1043 = vpack.c.b16 %v1042, %v1041
        %v1047 = vunpack.c.l.b16 %v887
        %v1048 = vunpack.c.l.b16 %v888
        %v1049 = vpack.c.b16 %v1048, %v1047
        %1051 = vmatpush.bf16.xpose.msra.mxu0 0
        %1052 = vmatpush.bf16.xpose.msra.mxu0 0
        %1053 = vmatpush.bf16.xpose.msra.mxu0 0
        %1054 = vmatpush.bf16.xpose.msra.mxu0 0
        %1055 = vmatpush.bf16.xpose.msra.mxu0 0
        %1056 = vmatpush.bf16.xpose.msra.mxu0 0
        %1057 = vmatpush.bf16.xpose.msra.mxu0 0
        %1058 = vmatpush.bf16.xpose.msra.mxu0 %v1049
        %1059 = vmatmul.bf16.gmra.mxu0 %v1043
        %v1060 = vpop.f32.mrf.mxu0
        %v1061 = vadd.f32 0.0, %v1060
        %v1062 = vpop.f32.mrf.mxu0
        %v1063 = vadd.f32 0.0, %v1062
        %1064 = vdwg.mxu0
        %v1067 = vunpack.c.l.b16 %v905
        %v1068 = vunpack.c.l.b16 %v906
        %v1069 = vpack.c.b16 %v1068, %v1067
        %v1073 = vunpack.c.l.b16 %v889
        %v1074 = vunpack.c.l.b16 %v890
        %v1075 = vpack.c.b16 %v1074, %v1073
        %1077 = vmatpush.bf16.xpose.msra.mxu0 0
        %1078 = vmatpush.bf16.xpose.msra.mxu0 0
        %1079 = vmatpush.bf16.xpose.msra.mxu0 0
        %1080 = vmatpush.bf16.xpose.msra.mxu0 0
        %1081 = vmatpush.bf16.xpose.msra.mxu0 0
        %1082 = vmatpush.bf16.xpose.msra.mxu0 0
        %1083 = vmatpush.bf16.xpose.msra.mxu0 0
        %1084 = vmatpush.bf16.xpose.msra.mxu0 %v1075
        %1085 = vmatmul.bf16.gmra.mxu0 %v1069
        %v1086 = vpop.f32.mrf.mxu0
        %v1087 = vadd.f32 0.0, %v1086
        %v1088 = vpop.f32.mrf.mxu0
        %v1089 = vadd.f32 0.0, %v1088
        %1090 = vdwg.mxu0
        %v1093 = vunpack.c.l.b16 %v907
        %v1094 = vunpack.c.l.b16 %v908
        %v1095 = vpack.c.b16 %v1094, %v1093
        %v1099 = vunpack.c.l.b16 %v891
        %v1100 = vunpack.c.l.b16 %v892
        %v1101 = vpack.c.b16 %v1100, %v1099
        %1103 = vmatpush.bf16.xpose.msra.mxu0 0
        %1104 = vmatpush.bf16.xpose.msra.mxu0 0
        %1105 = vmatpush.bf16.xpose.msra.mxu0 0
        %1106 = vmatpush.bf16.xpose.msra.mxu0 0
        %1107 = vmatpush.bf16.xpose.msra.mxu0 0
        %1108 = vmatpush.bf16.xpose.msra.mxu0 0
        %1109 = vmatpush.bf16.xpose.msra.mxu0 0
        %1110 = vmatpush.bf16.xpose.msra.mxu0 %v1101
        %1111 = vmatmul.bf16.gmra.mxu0 %v1095
        %v1112 = vpop.f32.mrf.mxu0
        %v1113 = vadd.f32 0.0, %v1112
        %v1114 = vpop.f32.mrf.mxu0
        %v1115 = vadd.f32 0.0, %v1114
        %1116 = vdwg.mxu0
        %v1117 = vmul.f32 %v931, 0.088388346
        %v1118 = vmul.f32 %v933, 0.088388346
        %v1119 = vmul.f32 %v957, 0.088388346
        %v1120 = vmul.f32 %v959, 0.088388346
        %v1121 = vmul.f32 %v983, 0.088388346
        %v1122 = vmul.f32 %v985, 0.088388346
        %v1123 = vmul.f32 %v1009, 0.088388346
        %v1124 = vmul.f32 %v1011, 0.088388346
        %v1125 = vmul.f32 %v1035, 0.088388346
        %v1126 = vmul.f32 %v1037, 0.088388346
        %v1127 = vmul.f32 %v1061, 0.088388346
        %v1128 = vmul.f32 %v1063, 0.088388346
        %v1129 = vmul.f32 %v1087, 0.088388346
        %v1130 = vmul.f32 %v1089, 0.088388346
        %v1131 = vmul.f32 %v1113, 0.088388346
        %v1132 = vmul.f32 %v1115, 0.088388346
        %v1133 = vld [vmem:[%s433] sm:$0xff]
        %v1135 = vrot.slane %v1133, 1
        %v1136 = vrot.slane %v1133, 2
        %v1137 = vrot.slane %v1133, 3
        %v1138 = vrot.slane %v1133, 4
        %v1139 = vrot.slane %v1133, 5
        %v1140 = vrot.slane %v1133, 6
        %v1141 = vrot.slane %v1133, 7
        %v1142 = vperm.slane %v1133, 0
        %v1143 = vperm.slane %v1135, 0
        %v1144 = vperm.slane %v1136, 0
        %v1145 = vperm.slane %v1137, 0
        %v1146 = vperm.slane %v1138, 0
        %v1147 = vperm.slane %v1139, 0
        %v1148 = vperm.slane %v1140, 0
        %v1149 = vperm.slane %v1141, 0
        %v1158 = vadd.f32 %v1117, %v1142
        %v1159 = vadd.f32 %v1118, %v1142
        %v1160 = vadd.f32 %v1119, %v1143
        %v1161 = vadd.f32 %v1120, %v1143
        %v1162 = vadd.f32 %v1121, %v1144
        %v1163 = vadd.f32 %v1122, %v1144
        %v1164 = vadd.f32 %v1123, %v1145
        %v1165 = vadd.f32 %v1124, %v1145
        %v1166 = vadd.f32 %v1125, %v1146
        %v1167 = vadd.f32 %v1126, %v1146
        %v1168 = vadd.f32 %v1127, %v1147
        %v1169 = vadd.f32 %v1128, %v1147
        %v1170 = vadd.f32 %v1129, %v1148
        %v1171 = vadd.f32 %v1130, %v1148
        %v1172 = vadd.f32 %v1131, %v1149
        %v1173 = vadd.f32 %v1132, %v1149
        %vm1174 = vcmask 130048
        %v1175 = vsel %vm1174, %v1158, -inf
        %1176 = vmax.xlane.f32.xlu0 %v1175
        %v1177 = vpop.xlane.xlu0 %1176
        %v1178 = vsel %vm1174, %v1159, -inf
        %1179 = vmax.xlane.f32.xlu0 %v1178
        %v1180 = vpop.xlane.xlu0 %1179
        %v1181 = vsel %vm1174, %v1160, -inf
        %1182 = vmax.xlane.f32.xlu0 %v1181
        %v1183 = vpop.xlane.xlu0 %1182
        %v1184 = vsel %vm1174, %v1161, -inf
        %1185 = vmax.xlane.f32.xlu0 %v1184
        %v1186 = vpop.xlane.xlu0 %1185
        %v1187 = vsel %vm1174, %v1162, -inf
        %1188 = vmax.xlane.f32.xlu0 %v1187
        %v1189 = vpop.xlane.xlu0 %1188
        %v1190 = vsel %vm1174, %v1163, -inf
        %1191 = vmax.xlane.f32.xlu0 %v1190
        %v1192 = vpop.xlane.xlu0 %1191
        %v1193 = vsel %vm1174, %v1164, -inf
        %1194 = vmax.xlane.f32.xlu0 %v1193
        %v1195 = vpop.xlane.xlu0 %1194
        %v1196 = vsel %vm1174, %v1165, -inf
        %1197 = vmax.xlane.f32.xlu0 %v1196
        %v1198 = vpop.xlane.xlu0 %1197
        %v1199 = vsel %vm1174, %v1166, -inf
        %1200 = vmax.xlane.f32.xlu0 %v1199
        %v1201 = vpop.xlane.xlu0 %1200
        %v1202 = vsel %vm1174, %v1167, -inf
        %1203 = vmax.xlane.f32.xlu0 %v1202
        %v1204 = vpop.xlane.xlu0 %1203
        %v1205 = vsel %vm1174, %v1168, -inf
        %1206 = vmax.xlane.f32.xlu0 %v1205
        %v1207 = vpop.xlane.xlu0 %1206
        %v1208 = vsel %vm1174, %v1169, -inf
        %1209 = vmax.xlane.f32.xlu0 %v1208
        %v1210 = vpop.xlane.xlu0 %1209
        %v1211 = vsel %vm1174, %v1170, -inf
        %1212 = vmax.xlane.f32.xlu0 %v1211
        %v1213 = vpop.xlane.xlu0 %1212
        %v1214 = vsel %vm1174, %v1171, -inf
        %1215 = vmax.xlane.f32.xlu0 %v1214
        %v1216 = vpop.xlane.xlu0 %1215
        %v1217 = vsel %vm1174, %v1172, -inf
        %1218 = vmax.xlane.f32.xlu0 %v1217
        %v1219 = vpop.xlane.xlu0 %1218
        %v1220 = vsel %vm1174, %v1173, -inf
        %1221 = vmax.xlane.f32.xlu0 %v1220
        %v1222 = vpop.xlane.xlu0 %1221
        %v1223 = vsub.f32 %v1158, %v1177
        %v1224 = vsub.f32 %v1159, %v1180
        %v1225 = vsub.f32 %v1160, %v1183
        %v1226 = vsub.f32 %v1161, %v1186
        %v1227 = vsub.f32 %v1162, %v1189
        %v1228 = vsub.f32 %v1163, %v1192
        %v1229 = vsub.f32 %v1164, %v1195
        %v1230 = vsub.f32 %v1165, %v1198
        %v1231 = vsub.f32 %v1166, %v1201
        %v1232 = vsub.f32 %v1167, %v1204
        %v1233 = vsub.f32 %v1168, %v1207
        %v1234 = vsub.f32 %v1169, %v1210
        %v1235 = vsub.f32 %v1170, %v1213
        %v1236 = vsub.f32 %v1171, %v1216
        %v1237 = vsub.f32 %v1172, %v1219
        %v1238 = vsub.f32 %v1173, %v1222
        %v1239 = vmul.f32 %v1223, 1.442695
        %v1240 = vpow.pop %v1239
        %v1241 = vmul.f32 %v1224, 1.442695
        %v1242 = vpow.pop %v1241
        %v1243 = vmul.f32 %v1225, 1.442695
        %v1244 = vpow.pop %v1243
        %v1245 = vmul.f32 %v1226, 1.442695
        %v1246 = vpow.pop %v1245
        %v1247 = vmul.f32 %v1227, 1.442695
        %v1248 = vpow.pop %v1247
        %v1249 = vmul.f32 %v1228, 1.442695
        %v1250 = vpow.pop %v1249
        %v1251 = vmul.f32 %v1229, 1.442695
        %v1252 = vpow.pop %v1251
        %v1253 = vmul.f32 %v1230, 1.442695
        %v1254 = vpow.pop %v1253
        %v1255 = vmul.f32 %v1231, 1.442695
        %v1256 = vpow.pop %v1255
        %v1257 = vmul.f32 %v1232, 1.442695
        %v1258 = vpow.pop %v1257
        %v1259 = vmul.f32 %v1233, 1.442695
        %v1260 = vpow.pop %v1259
        %v1261 = vmul.f32 %v1234, 1.442695
        %v1262 = vpow.pop %v1261
        %v1263 = vmul.f32 %v1235, 1.442695
        %v1264 = vpow.pop %v1263
        %v1265 = vmul.f32 %v1236, 1.442695
        %v1266 = vpow.pop %v1265
        %v1267 = vmul.f32 %v1237, 1.442695
        %v1268 = vpow.pop %v1267
        %v1269 = vmul.f32 %v1238, 1.442695
        %v1270 = vpow.pop %v1269
        %v1271 = vsel %vm1174, %v1240, 0.0
        %1272 = vadd.xlane.f32.xlu0 %v1271
        %v1273 = vpop.xlane.xlu0 %1272
        %v1274 = vsel %vm1174, %v1242, 0.0
        %1275 = vadd.xlane.f32.xlu0 %v1274
        %v1276 = vpop.xlane.xlu0 %1275
        %v1277 = vsel %vm1174, %v1244, 0.0
        %1278 = vadd.xlane.f32.xlu0 %v1277
        %v1279 = vpop.xlane.xlu0 %1278
        %v1280 = vsel %vm1174, %v1246, 0.0
        %1281 = vadd.xlane.f32.xlu0 %v1280
        %v1282 = vpop.xlane.xlu0 %1281
        %v1283 = vsel %vm1174, %v1248, 0.0
        %1284 = vadd.xlane.f32.xlu0 %v1283
        %v1285 = vpop.xlane.xlu0 %1284
        %v1286 = vsel %vm1174, %v1250, 0.0
        %1287 = vadd.xlane.f32.xlu0 %v1286
        %v1288 = vpop.xlane.xlu0 %1287
        %v1289 = vsel %vm1174, %v1252, 0.0
        %1290 = vadd.xlane.f32.xlu0 %v1289
        %v1291 = vpop.xlane.xlu0 %1290
        %v1292 = vsel %vm1174, %v1254, 0.0
        %1293 = vadd.xlane.f32.xlu0 %v1292
        %v1294 = vpop.xlane.xlu0 %1293
        %v1295 = vsel %vm1174, %v1256, 0.0
        %1296 = vadd.xlane.f32.xlu0 %v1295
        %v1297 = vpop.xlane.xlu0 %1296
        %v1298 = vsel %vm1174, %v1258, 0.0
        %1299 = vadd.xlane.f32.xlu0 %v1298
        %v1300 = vpop.xlane.xlu0 %1299
        %v1301 = vsel %vm1174, %v1260, 0.0
        %1302 = vadd.xlane.f32.xlu0 %v1301
        %v1303 = vpop.xlane.xlu0 %1302
        %v1304 = vsel %vm1174, %v1262, 0.0
        %1305 = vadd.xlane.f32.xlu0 %v1304
        %v1306 = vpop.xlane.xlu0 %1305
        %v1307 = vsel %vm1174, %v1264, 0.0
        %1308 = vadd.xlane.f32.xlu0 %v1307
        %v1309 = vpop.xlane.xlu0 %1308
        %v1310 = vsel %vm1174, %v1266, 0.0
        %1311 = vadd.xlane.f32.xlu0 %v1310
        %v1312 = vpop.xlane.xlu0 %1311
        %v1313 = vsel %vm1174, %v1268, 0.0
        %1314 = vadd.xlane.f32.xlu0 %v1313
        %v1315 = vpop.xlane.xlu0 %1314
        %v1316 = vsel %vm1174, %v1270, 0.0
        %1317 = vadd.xlane.f32.xlu0 %v1316
        %v1318 = vpop.xlane.xlu0 %1317
        %v1319 = vrcp.pop %v1273
        %v1320 = vrcp.pop %v1276
        %v1321 = vrcp.pop %v1279
        %v1322 = vrcp.pop %v1282
        %v1323 = vrcp.pop %v1285
        %v1324 = vrcp.pop %v1288
        %v1325 = vrcp.pop %v1291
        %v1326 = vrcp.pop %v1294
        %v1327 = vrcp.pop %v1297
        %v1328 = vrcp.pop %v1300
        %v1329 = vrcp.pop %v1303
        %v1330 = vrcp.pop %v1306
        %v1331 = vrcp.pop %v1309
        %v1332 = vrcp.pop %v1312
        %v1333 = vrcp.pop %v1315
        %v1334 = vrcp.pop %v1318
        %v1335 = vmul.f32 %v1240, %v1319
        %v1336 = vmul.f32 %v1242, %v1320
        %v1337 = vmul.f32 %v1244, %v1321
        %v1338 = vmul.f32 %v1246, %v1322
        %v1339 = vmul.f32 %v1248, %v1323
        %v1340 = vmul.f32 %v1250, %v1324
        %v1341 = vmul.f32 %v1252, %v1325
        %v1342 = vmul.f32 %v1254, %v1326
        %v1343 = vmul.f32 %v1256, %v1327
        %v1344 = vmul.f32 %v1258, %v1328
        %v1345 = vmul.f32 %v1260, %v1329
        %v1346 = vmul.f32 %v1262, %v1330
        %v1347 = vmul.f32 %v1264, %v1331
        %v1348 = vmul.f32 %v1266, %v1332
        %v1349 = vmul.f32 %v1268, %v1333
        %v1350 = vmul.f32 %v1270, %v1334
        %v1351 = vpack.c.bf16 %v1335, %v1335
        %v1352 = vpack.c.bf16 %v1336, %v1336
        %v1353 = vpack.c.bf16 %v1337, %v1337
        %v1354 = vpack.c.bf16 %v1338, %v1338
        %v1355 = vpack.c.bf16 %v1339, %v1339
        %v1356 = vpack.c.bf16 %v1340, %v1340
        %v1357 = vpack.c.bf16 %v1341, %v1341
        %v1358 = vpack.c.bf16 %v1342, %v1342
        %v1359 = vpack.c.bf16 %v1343, %v1343
        %v1360 = vpack.c.bf16 %v1344, %v1344
        %v1361 = vpack.c.bf16 %v1345, %v1345
        %v1362 = vpack.c.bf16 %v1346, %v1346
        %v1363 = vpack.c.bf16 %v1347, %v1347
        %v1364 = vpack.c.bf16 %v1348, %v1348
        %v1365 = vpack.c.bf16 %v1349, %v1349
        %v1366 = vpack.c.bf16 %v1350, %v1350
        %v1369 = vunpack.c.l.b16 %v1351
        %v1370 = vunpack.c.l.b16 %v1352
        %v1371 = vpack.c.b16 %v1370, %v1369
        %v1373 = vsel %vm1174, %v1371, 0
        %1375 = vmatpush.bf16.msra.mxu0 0
        %1376 = vmatpush.bf16.msra.mxu0 0
        %1377 = vmatpush.bf16.msra.mxu0 0
        %1378 = vmatpush.bf16.msra.mxu0 0
        %1379 = vmatpush.bf16.msra.mxu0 0
        %1380 = vmatpush.bf16.msra.mxu0 0
        %1381 = vmatpush.bf16.msra.mxu0 0
        %1382 = vmatpush.bf16.msra.mxu0 %v919
        %1383 = vmatmul.bf16.gmra.mxu0 %v1373
        %v1384 = vpop.f32.mrf.mxu0
        %v1385 = vadd.f32 0.0, %v1384
        %v1386 = vpop.f32.mrf.mxu0
        %v1387 = vadd.f32 0.0, %v1386
        %1388 = vdwg.mxu0
        %v1391 = vunpack.c.l.b16 %v1353
        %v1392 = vunpack.c.l.b16 %v1354
        %v1393 = vpack.c.b16 %v1392, %v1391
        %v1395 = vsel %vm1174, %v1393, 0
        %1397 = vmatpush.bf16.msra.mxu0 0
        %1398 = vmatpush.bf16.msra.mxu0 0
        %1399 = vmatpush.bf16.msra.mxu0 0
        %1400 = vmatpush.bf16.msra.mxu0 0
        %1401 = vmatpush.bf16.msra.mxu0 0
        %1402 = vmatpush.bf16.msra.mxu0 0
        %1403 = vmatpush.bf16.msra.mxu0 0
        %1404 = vmatpush.bf16.msra.mxu0 %v945
        %1405 = vmatmul.bf16.gmra.mxu0 %v1395
        %v1406 = vpop.f32.mrf.mxu0
        %v1407 = vadd.f32 0.0, %v1406
        %v1408 = vpop.f32.mrf.mxu0
        %v1409 = vadd.f32 0.0, %v1408
        %1410 = vdwg.mxu0
        %v1413 = vunpack.c.l.b16 %v1355
        %v1414 = vunpack.c.l.b16 %v1356
        %v1415 = vpack.c.b16 %v1414, %v1413
        %v1417 = vsel %vm1174, %v1415, 0
        %1419 = vmatpush.bf16.msra.mxu0 0
        %1420 = vmatpush.bf16.msra.mxu0 0
        %1421 = vmatpush.bf16.msra.mxu0 0
        %1422 = vmatpush.bf16.msra.mxu0 0
        %1423 = vmatpush.bf16.msra.mxu0 0
        %1424 = vmatpush.bf16.msra.mxu0 0
        %1425 = vmatpush.bf16.msra.mxu0 0
        %1426 = vmatpush.bf16.msra.mxu0 %v971
        %1427 = vmatmul.bf16.gmra.mxu0 %v1417
        %v1428 = vpop.f32.mrf.mxu0
        %v1429 = vadd.f32 0.0, %v1428
        %v1430 = vpop.f32.mrf.mxu0
        %v1431 = vadd.f32 0.0, %v1430
        %1432 = vdwg.mxu0
        %v1435 = vunpack.c.l.b16 %v1357
        %v1436 = vunpack.c.l.b16 %v1358
        %v1437 = vpack.c.b16 %v1436, %v1435
        %v1439 = vsel %vm1174, %v1437, 0
        %1441 = vmatpush.bf16.msra.mxu0 0
        %1442 = vmatpush.bf16.msra.mxu0 0
        %1443 = vmatpush.bf16.msra.mxu0 0
        %1444 = vmatpush.bf16.msra.mxu0 0
        %1445 = vmatpush.bf16.msra.mxu0 0
        %1446 = vmatpush.bf16.msra.mxu0 0
        %1447 = vmatpush.bf16.msra.mxu0 0
        %1448 = vmatpush.bf16.msra.mxu0 %v997
        %1449 = vmatmul.bf16.gmra.mxu0 %v1439
        %v1450 = vpop.f32.mrf.mxu0
        %v1451 = vadd.f32 0.0, %v1450
        %v1452 = vpop.f32.mrf.mxu0
        %v1453 = vadd.f32 0.0, %v1452
        %1454 = vdwg.mxu0
        %v1457 = vunpack.c.l.b16 %v1359
        %v1458 = vunpack.c.l.b16 %v1360
        %v1459 = vpack.c.b16 %v1458, %v1457
        %v1461 = vsel %vm1174, %v1459, 0
        %1463 = vmatpush.bf16.msra.mxu0 0
        %1464 = vmatpush.bf16.msra.mxu0 0
        %1465 = vmatpush.bf16.msra.mxu0 0
        %1466 = vmatpush.bf16.msra.mxu0 0
        %1467 = vmatpush.bf16.msra.mxu0 0
        %1468 = vmatpush.bf16.msra.mxu0 0
        %1469 = vmatpush.bf16.msra.mxu0 0
        %1470 = vmatpush.bf16.msra.mxu0 %v1023
        %1471 = vmatmul.bf16.gmra.mxu0 %v1461
        %v1472 = vpop.f32.mrf.mxu0
        %v1473 = vadd.f32 0.0, %v1472
        %v1474 = vpop.f32.mrf.mxu0
        %v1475 = vadd.f32 0.0, %v1474
        %1476 = vdwg.mxu0
        %v1479 = vunpack.c.l.b16 %v1361
        %v1480 = vunpack.c.l.b16 %v1362
        %v1481 = vpack.c.b16 %v1480, %v1479
        %v1483 = vsel %vm1174, %v1481, 0
        %1485 = vmatpush.bf16.msra.mxu0 0
        %1486 = vmatpush.bf16.msra.mxu0 0
        %1487 = vmatpush.bf16.msra.mxu0 0
        %1488 = vmatpush.bf16.msra.mxu0 0
        %1489 = vmatpush.bf16.msra.mxu0 0
        %1490 = vmatpush.bf16.msra.mxu0 0
        %1491 = vmatpush.bf16.msra.mxu0 0
        %1492 = vmatpush.bf16.msra.mxu0 %v1049
        %1493 = vmatmul.bf16.gmra.mxu0 %v1483
        %v1494 = vpop.f32.mrf.mxu0
        %v1495 = vadd.f32 0.0, %v1494
        %v1496 = vpop.f32.mrf.mxu0
        %v1497 = vadd.f32 0.0, %v1496
        %1498 = vdwg.mxu0
        %v1501 = vunpack.c.l.b16 %v1363
        %v1502 = vunpack.c.l.b16 %v1364
        %v1503 = vpack.c.b16 %v1502, %v1501
        %v1505 = vsel %vm1174, %v1503, 0
        %1507 = vmatpush.bf16.msra.mxu0 0
        %1508 = vmatpush.bf16.msra.mxu0 0
        %1509 = vmatpush.bf16.msra.mxu0 0
        %1510 = vmatpush.bf16.msra.mxu0 0
        %1511 = vmatpush.bf16.msra.mxu0 0
        %1512 = vmatpush.bf16.msra.mxu0 0
        %1513 = vmatpush.bf16.msra.mxu0 0
        %1514 = vmatpush.bf16.msra.mxu0 %v1075
        %1515 = vmatmul.bf16.gmra.mxu0 %v1505
        %v1516 = vpop.f32.mrf.mxu0
        %v1517 = vadd.f32 0.0, %v1516
        %v1518 = vpop.f32.mrf.mxu0
        %v1519 = vadd.f32 0.0, %v1518
        %1520 = vdwg.mxu0
        %v1523 = vunpack.c.l.b16 %v1365
        %v1524 = vunpack.c.l.b16 %v1366
        %v1525 = vpack.c.b16 %v1524, %v1523
        %v1527 = vsel %vm1174, %v1525, 0
        %1529 = vmatpush.bf16.msra.mxu0 0
        %1530 = vmatpush.bf16.msra.mxu0 0
        %1531 = vmatpush.bf16.msra.mxu0 0
        %1532 = vmatpush.bf16.msra.mxu0 0
        %1533 = vmatpush.bf16.msra.mxu0 0
        %1534 = vmatpush.bf16.msra.mxu0 0
        %1535 = vmatpush.bf16.msra.mxu0 0
        %1536 = vmatpush.bf16.msra.mxu0 %v1101
        %1537 = vmatmul.bf16.gmra.mxu0 %v1527
        %v1538 = vpop.f32.mrf.mxu0
        %v1539 = vadd.f32 0.0, %v1538
        %v1540 = vpop.f32.mrf.mxu0
        %v1541 = vadd.f32 0.0, %v1540
        %1542 = vdwg.mxu0
        %v1543 = vpack.c.bf16 %v1387, %v1385
        %v1544 = vpack.c.bf16 %v1409, %v1407
        %v1545 = vpack.c.bf16 %v1431, %v1429
        %v1546 = vpack.c.bf16 %v1453, %v1451
        %v1547 = vpack.c.bf16 %v1475, %v1473
        %v1548 = vpack.c.bf16 %v1497, %v1495
        %v1549 = vpack.c.bf16 %v1519, %v1517
        %v1550 = vpack.c.bf16 %v1541, %v1539
        %v1551 = vld [vmem:[#allocation11] sm:$0xf]
        %v1552 = vld [vmem:[#allocation11 + $0x4] sm:$0xf]
        %v1553 = vld [vmem:[#allocation11 + $0x8] sm:$0xf]
        %v1554 = vld [vmem:[#allocation11 + $0xc] sm:$0xf]
        %v1555 = vld [vmem:[#allocation11 + $0x10] sm:$0xf]
        %v1556 = vld [vmem:[#allocation11 + $0x14] sm:$0xf]
        %v1557 = vld [vmem:[#allocation11 + $0x18] sm:$0xf]
        %v1558 = vld [vmem:[#allocation11 + $0x1c] sm:$0xf]
        %v1559 = vld [vmem:[#allocation11 + $0x20] sm:$0xf]
        %v1560 = vld [vmem:[#allocation11 + $0x24] sm:$0xf]
        %v1561 = vld [vmem:[#allocation11 + $0x28] sm:$0xf]
        %v1562 = vld [vmem:[#allocation11 + $0x2c] sm:$0xf]
        %v1563 = vld [vmem:[#allocation11 + $0x30] sm:$0xf]
        %v1564 = vld [vmem:[#allocation11 + $0x34] sm:$0xf]
        %v1565 = vld [vmem:[#allocation11 + $0x38] sm:$0xf]
        %v1566 = vld [vmem:[#allocation11 + $0x3c] sm:$0xf]
        %v1567 = vunpack.c.l.bf16 %v519
        %v1568 = vunpack.c.l.bf16 %v520
        %v1569 = vunpack.c.l.bf16 %v521
        %v1570 = vunpack.c.l.bf16 %v522
        %v1571 = vunpack.c.l.bf16 %v523
        %v1572 = vunpack.c.l.bf16 %v524
        %v1573 = vunpack.c.l.bf16 %v525
        %v1574 = vunpack.c.l.bf16 %v526
        %v1575 = vunpack.c.l.bf16 %v527
        %v1576 = vunpack.c.l.bf16 %v528
        %v1577 = vunpack.c.l.bf16 %v529
        %v1578 = vunpack.c.l.bf16 %v530
        %v1579 = vunpack.c.l.bf16 %v531
        %v1580 = vunpack.c.l.bf16 %v532
        %v1581 = vunpack.c.l.bf16 %v533
        %v1582 = vunpack.c.l.bf16 %v534
        %v1599 = vunpack.c.l.b16 %v1551
        %v1600 = vunpack.c.l.b16 %v1552
        %v1601 = vunpack.c.l.b16 %v1553
        %v1602 = vunpack.c.l.b16 %v1554
        %v1603 = vunpack.c.l.b16 %v1555
        %v1604 = vunpack.c.l.b16 %v1556
        %v1605 = vunpack.c.l.b16 %v1557
        %v1606 = vunpack.c.l.b16 %v1558
        %v1607 = vunpack.c.l.b16 %v1559
        %v1608 = vunpack.c.l.b16 %v1560
        %v1609 = vunpack.c.l.b16 %v1561
        %v1610 = vunpack.c.l.b16 %v1562
        %v1611 = vunpack.c.l.b16 %v1563
        %v1612 = vunpack.c.l.b16 %v1564
        %v1613 = vunpack.c.l.b16 %v1565
        %v1614 = vunpack.c.l.b16 %v1566
        %v1615 = vpack.c.b16 %v1600, %v1599
        %v1616 = vpack.c.b16 %v1602, %v1601
        %v1617 = vpack.c.b16 %v1604, %v1603
        %v1618 = vpack.c.b16 %v1606, %v1605
        %v1619 = vpack.c.b16 %v1608, %v1607
        %v1620 = vpack.c.b16 %v1610, %v1609
        %v1621 = vpack.c.b16 %v1612, %v1611
        %v1622 = vpack.c.b16 %v1614, %v1613
        %1631 = vmatpush.bf16.msra.mxu0 %v1622
        %1632 = vmatpush.bf16.msra.mxu0 %v1621
        %1633 = vmatpush.bf16.msra.mxu0 %v1620
        %1634 = vmatpush.bf16.msra.mxu0 %v1619
        %1635 = vmatpush.bf16.msra.mxu0 %v1618
        %1636 = vmatpush.bf16.msra.mxu0 %v1617
        %1637 = vmatpush.bf16.msra.mxu0 %v1616
        %1638 = vmatpush.bf16.msra.mxu0 %v1615
        %1639 = vmatmul.bf16.gmra.mxu0 %v1543
        %v1640 = vpop.f32.mrf.mxu0
        %v1641 = vadd.f32 %v1567, %v1640
        %v1642 = vpop.f32.mrf.mxu0
        %v1643 = vadd.f32 %v1568, %v1642
        %1644 = vmatmul.bf16.gmra.mxu0 %v1544
        %v1645 = vpop.f32.mrf.mxu0
        %v1646 = vadd.f32 %v1569, %v1645
        %v1647 = vpop.f32.mrf.mxu0
        %v1648 = vadd.f32 %v1570, %v1647
        %1649 = vmatmul.bf16.gmra.mxu0 %v1545
        %v1650 = vpop.f32.mrf.mxu0
        %v1651 = vadd.f32 %v1571, %v1650
        %v1652 = vpop.f32.mrf.mxu0
        %v1653 = vadd.f32 %v1572, %v1652
        %1654 = vmatmul.bf16.gmra.mxu0 %v1546
        %v1655 = vpop.f32.mrf.mxu0
        %v1656 = vadd.f32 %v1573, %v1655
        %v1657 = vpop.f32.mrf.mxu0
        %v1658 = vadd.f32 %v1574, %v1657
        %1659 = vmatmul.bf16.gmra.mxu0 %v1547
        %v1660 = vpop.f32.mrf.mxu0
        %v1661 = vadd.f32 %v1575, %v1660
        %v1662 = vpop.f32.mrf.mxu0
        %v1663 = vadd.f32 %v1576, %v1662
        %1664 = vmatmul.bf16.gmra.mxu0 %v1548
        %v1665 = vpop.f32.mrf.mxu0
        %v1666 = vadd.f32 %v1577, %v1665
        %v1667 = vpop.f32.mrf.mxu0
        %v1668 = vadd.f32 %v1578, %v1667
        %1669 = vmatmul.bf16.gmra.mxu0 %v1549
        %v1670 = vpop.f32.mrf.mxu0
        %v1671 = vadd.f32 %v1579, %v1670
        %v1672 = vpop.f32.mrf.mxu0
        %v1673 = vadd.f32 %v1580, %v1672
        %1674 = vmatmul.bf16.gmra.mxu0 %v1550
        %v1675 = vpop.f32.mrf.mxu0
        %v1676 = vadd.f32 %v1581, %v1675
        %v1677 = vpop.f32.mrf.mxu0
        %v1678 = vadd.f32 %v1582, %v1677
        %1679 = vdwg.mxu0
        %v1680 = vmax.f32 %v1641, 0.0
        %v1681 = vmax.f32 %v1643, 0.0
        %v1682 = vmax.f32 %v1646, 0.0
        %v1683 = vmax.f32 %v1648, 0.0
        %v1684 = vmax.f32 %v1651, 0.0
        %v1685 = vmax.f32 %v1653, 0.0
        %v1686 = vmax.f32 %v1656, 0.0
        %v1687 = vmax.f32 %v1658, 0.0
        %v1688 = vmax.f32 %v1661, 0.0
        %v1689 = vmax.f32 %v1663, 0.0
        %v1690 = vmax.f32 %v1666, 0.0
        %v1691 = vmax.f32 %v1668, 0.0
        %v1692 = vmax.f32 %v1671, 0.0
        %v1693 = vmax.f32 %v1673, 0.0
        %v1694 = vmax.f32 %v1676, 0.0
        %v1695 = vmax.f32 %v1678, 0.0
        %v1696 = vpack.c.bf16 %v1681, %v1680
        %v1697 = vpack.c.bf16 %v1683, %v1682
        %v1698 = vpack.c.bf16 %v1685, %v1684
        %v1699 = vpack.c.bf16 %v1687, %v1686
        %v1700 = vpack.c.bf16 %v1689, %v1688
        %v1701 = vpack.c.bf16 %v1691, %v1690
        %v1702 = vpack.c.bf16 %v1693, %v1692
        %v1703 = vpack.c.bf16 %v1695, %v1694
        %v1704 = vld [vmem:[#allocation13] sm:$0xff]
        %v1705 = vld [vmem:[#allocation13 + $0x8] sm:$0xff]
        %v1706 = vld [vmem:[#allocation13 + $0x10] sm:$0xff]
        %v1707 = vld [vmem:[#allocation13 + $0x18] sm:$0xff]
        %v1708 = vld [vmem:[#allocation13 + $0x20] sm:$0xff]
        %v1709 = vld [vmem:[#allocation13 + $0x28] sm:$0xff]
        %v1710 = vld [vmem:[#allocation13 + $0x30] sm:$0xff]
        %v1711 = vld [vmem:[#allocation13 + $0x38] sm:$0xff]
        %v1712 = vld [vmem:[#allocation13 + $0x40] sm:$0xff]
        %v1713 = vld [vmem:[#allocation13 + $0x48] sm:$0xff]
        %v1714 = vld [vmem:[#allocation13 + $0x50] sm:$0xff]
        %v1715 = vld [vmem:[#allocation13 + $0x58] sm:$0xff]
        %v1716 = vld [vmem:[#allocation13 + $0x60] sm:$0xff]
        %v1717 = vld [vmem:[#allocation13 + $0x68] sm:$0xff]
        %v1718 = vld [vmem:[#allocation13 + $0x70] sm:$0xff]
        %v1719 = vld [vmem:[#allocation13 + $0x78] sm:$0xff]
        %v1720 = vld [vmem:[%s8] sm:$0x3]
        %v1722 = vperm.slane %v1720, 0
        %v1723 = vperm.slane %v1720, 1
        %v1742 = vunpack.c.l.b16 %v1704
        %v1743 = vunpack.c.h.b16 %v1704
        %v1744 = vunpack.c.l.b16 %v1705
        %v1745 = vunpack.c.h.b16 %v1705
        %v1746 = vunpack.c.l.b16 %v1706
        %v1747 = vunpack.c.h.b16 %v1706
        %v1748 = vunpack.c.l.b16 %v1707
        %v1749 = vunpack.c.h.b16 %v1707
        %v1750 = vunpack.c.l.b16 %v1708
        %v1751 = vunpack.c.h.b16 %v1708
        %v1752 = vunpack.c.l.b16 %v1709
        %v1753 = vunpack.c.h.b16 %v1709
        %v1754 = vunpack.c.l.b16 %v1710
        %v1755 = vunpack.c.h.b16 %v1710
        %v1756 = vunpack.c.l.b16 %v1711
        %v1757 = vunpack.c.h.b16 %v1711
        %v1758 = vunpack.c.l.b16 %v1712
        %v1759 = vunpack.c.h.b16 %v1712
        %v1760 = vunpack.c.l.b16 %v1713
        %v1761 = vunpack.c.h.b16 %v1713
        %v1762 = vunpack.c.l.b16 %v1714
        %v1763 = vunpack.c.h.b16 %v1714
        %v1764 = vunpack.c.l.b16 %v1715
        %v1765 = vunpack.c.h.b16 %v1715
        %v1766 = vunpack.c.l.b16 %v1716
        %v1767 = vunpack.c.h.b16 %v1716
        %v1768 = vunpack.c.l.b16 %v1717
        %v1769 = vunpack.c.h.b16 %v1717
        %v1770 = vunpack.c.l.b16 %v1718
        %v1771 = vunpack.c.h.b16 %v1718
        %v1772 = vunpack.c.l.b16 %v1719
        %v1773 = vunpack.c.h.b16 %v1719
        %v1774 = vpack.c.b16 %v1744, %v1742
        %v1775 = vpack.c.b16 %v1745, %v1743
        %v1776 = vpack.c.b16 %v1748, %v1746
        %v1777 = vpack.c.b16 %v1749, %v1747
        %v1778 = vpack.c.b16 %v1752, %v1750
        %v1779 = vpack.c.b16 %v1753, %v1751
        %v1780 = vpack.c.b16 %v1756, %v1754
        %v1781 = vpack.c.b16 %v1757, %v1755
        %v1782 = vpack.c.b16 %v1760, %v1758
        %v1783 = vpack.c.b16 %v1761, %v1759
        %v1784 = vpack.c.b16 %v1764, %v1762
        %v1785 = vpack.c.b16 %v1765, %v1763
        %v1786 = vpack.c.b16 %v1768, %v1766
        %v1787 = vpack.c.b16 %v1769, %v1767
        %v1788 = vpack.c.b16 %v1772, %v1770
        %v1789 = vpack.c.b16 %v1773, %v1771
        %1806 = vmatpush.bf16.msra.mxu0 %v1788
        %1807 = vmatpush.bf16.msra.mxu0 %v1786
        %1808 = vmatpush.bf16.msra.mxu0 %v1784
        %1809 = vmatpush.bf16.msra.mxu0 %v1782
        %1810 = vmatpush.bf16.msra.mxu0 %v1780
        %1811 = vmatpush.bf16.msra.mxu0 %v1778
        %1812 = vmatpush.bf16.msra.mxu0 %v1776
        %1813 = vmatpush.bf16.msra.mxu0 %v1774
        %1814 = vmatmul.bf16.gmra.mxu0 %v1696
        %v1815 = vpop.f32.mrf.mxu0
        %v1816 = vadd.f32 %v1722, %v1815
        %v1817 = vpop.f32.mrf.mxu0
        %v1818 = vadd.f32 %v1722, %v1817
        %1819 = vmatmul.bf16.gmra.mxu0 %v1697
        %v1820 = vpop.f32.mrf.mxu0
        %v1821 = vadd.f32 %v1722, %v1820
        %v1822 = vpop.f32.mrf.mxu0
        %v1823 = vadd.f32 %v1722, %v1822
        %1824 = vmatmul.bf16.gmra.mxu0 %v1698
        %v1825 = vpop.f32.mrf.mxu0
        %v1826 = vadd.f32 %v1722, %v1825
        %v1827 = vpop.f32.mrf.mxu0
        %v1828 = vadd.f32 %v1722, %v1827
        %1829 = vmatmul.bf16.gmra.mxu0 %v1699
        %v1830 = vpop.f32.mrf.mxu0
        %v1831 = vadd.f32 %v1722, %v1830
        %v1832 = vpop.f32.mrf.mxu0
        %v1833 = vadd.f32 %v1722, %v1832
        %1834 = vmatmul.bf16.gmra.mxu0 %v1700
        %v1835 = vpop.f32.mrf.mxu0
        %v1836 = vadd.f32 %v1722, %v1835
        %v1837 = vpop.f32.mrf.mxu0
        %v1838 = vadd.f32 %v1722, %v1837
        %1839 = vmatmul.bf16.gmra.mxu0 %v1701
        %v1840 = vpop.f32.mrf.mxu0
        %v1841 = vadd.f32 %v1722, %v1840
        %v1842 = vpop.f32.mrf.mxu0
        %v1843 = vadd.f32 %v1722, %v1842
        %1844 = vmatmul.bf16.gmra.mxu0 %v1702
        %v1845 = vpop.f32.mrf.mxu0
        %v1846 = vadd.f32 %v1722, %v1845
        %v1847 = vpop.f32.mrf.mxu0
        %v1848 = vadd.f32 %v1722, %v1847
        %1849 = vmatmul.bf16.gmra.mxu0 %v1703
        %v1850 = vpop.f32.mrf.mxu0
        %v1851 = vadd.f32 %v1722, %v1850
        %v1852 = vpop.f32.mrf.mxu0
        %v1853 = vadd.f32 %v1722, %v1852
        %1854 = vdwg.mxu0
        %1855 = vmatpush.bf16.msra.mxu0 %v1789
        %1856 = vmatpush.bf16.msra.mxu0 %v1787
        %1857 = vmatpush.bf16.msra.mxu0 %v1785
        %1858 = vmatpush.bf16.msra.mxu0 %v1783
        %1859 = vmatpush.bf16.msra.mxu0 %v1781
        %1860 = vmatpush.bf16.msra.mxu0 %v1779
        %1861 = vmatpush.bf16.msra.mxu0 %v1777
        %1862 = vmatpush.bf16.msra.mxu0 %v1775
        %1863 = vmatmul.bf16.gmra.mxu0 %v1696
        %v1864 = vpop.f32.mrf.mxu0
        %v1865 = vadd.f32 %v1723, %v1864
        %v1866 = vpop.f32.mrf.mxu0
        %v1867 = vadd.f32 %v1723, %v1866
        %1868 = vmatmul.bf16.gmra.mxu0 %v1697
        %v1869 = vpop.f32.mrf.mxu0
        %v1870 = vadd.f32 %v1723, %v1869
        %v1871 = vpop.f32.mrf.mxu0
        %v1872 = vadd.f32 %v1723, %v1871
        %1873 = vmatmul.bf16.gmra.mxu0 %v1698
        %v1874 = vpop.f32.mrf.mxu0
        %v1875 = vadd.f32 %v1723, %v1874
        %v1876 = vpop.f32.mrf.mxu0
        %v1877 = vadd.f32 %v1723, %v1876
        %1878 = vmatmul.bf16.gmra.mxu0 %v1699
        %v1879 = vpop.f32.mrf.mxu0
        %v1880 = vadd.f32 %v1723, %v1879
        %v1881 = vpop.f32.mrf.mxu0
        %v1882 = vadd.f32 %v1723, %v1881
        %1883 = vmatmul.bf16.gmra.mxu0 %v1700
        %v1884 = vpop.f32.mrf.mxu0
        %v1885 = vadd.f32 %v1723, %v1884
        %v1886 = vpop.f32.mrf.mxu0
        %v1887 = vadd.f32 %v1723, %v1886
        %1888 = vmatmul.bf16.gmra.mxu0 %v1701
        %v1889 = vpop.f32.mrf.mxu0
        %v1890 = vadd.f32 %v1723, %v1889
        %v1891 = vpop.f32.mrf.mxu0
        %v1892 = vadd.f32 %v1723, %v1891
        %1893 = vmatmul.bf16.gmra.mxu0 %v1702
        %v1894 = vpop.f32.mrf.mxu0
        %v1895 = vadd.f32 %v1723, %v1894
        %v1896 = vpop.f32.mrf.mxu0
        %v1897 = vadd.f32 %v1723, %v1896
        %1898 = vmatmul.bf16.gmra.mxu0 %v1703
        %v1899 = vpop.f32.mrf.mxu0
        %v1900 = vadd.f32 %v1723, %v1899
        %v1901 = vpop.f32.mrf.mxu0
        %v1902 = vadd.f32 %v1723, %v1901
        %1903 = vdwg.mxu0
        %1904 = vst [vmem:[%s498] sm:$0xff] %v1816
        %1905 = vst [vmem:[%s498 + $0x8] sm:$0xff] %v1865
        %1906 = vst [vmem:[%s498 + $0x10] sm:$0xff] %v1818
        %1907 = vst [vmem:[%s498 + $0x18] sm:$0xff] %v1867
        %1908 = vst [vmem:[%s498 + $0x20] sm:$0xff] %v1821
        %1909 = vst [vmem:[%s498 + $0x28] sm:$0xff] %v1870
        %1910 = vst [vmem:[%s498 + $0x30] sm:$0xff] %v1823
        %1911 = vst [vmem:[%s498 + $0x38] sm:$0xff] %v1872
        %1912 = vst [vmem:[%s498 + $0x40] sm:$0xff] %v1826
        %1913 = vst [vmem:[%s498 + $0x48] sm:$0xff] %v1875
        %1914 = vst [vmem:[%s498 + $0x50] sm:$0xff] %v1828
        %1915 = vst [vmem:[%s498 + $0x58] sm:$0xff] %v1877
        %1916 = vst [vmem:[%s498 + $0x60] sm:$0xff] %v1831
        %1917 = vst [vmem:[%s498 + $0x68] sm:$0xff] %v1880
        %1918 = vst [vmem:[%s498 + $0x70] sm:$0xff] %v1833
        %1919 = vst [vmem:[%s498 + $0x78] sm:$0xff] %v1882
        %1920 = vst [vmem:[%s498 + $0x80] sm:$0xff] %v1836
        %1921 = vst [vmem:[%s498 + $0x88] sm:$0xff] %v1885
        %1922 = vst [vmem:[%s498 + $0x90] sm:$0xff] %v1838
        %1923 = vst [vmem:[%s498 + $0x98] sm:$0xff] %v1887
        %1924 = vst [vmem:[%s498 + $0xa0] sm:$0xff] %v1841
        %1925 = vst [vmem:[%s498 + $0xa8] sm:$0xff] %v1890
        %1926 = vst [vmem:[%s498 + $0xb0] sm:$0xff] %v1843
        %1927 = vst [vmem:[%s498 + $0xb8] sm:$0xff] %v1892
        %1928 = vst [vmem:[%s498 + $0xc0] sm:$0xff] %v1846
        %1929 = vst [vmem:[%s498 + $0xc8] sm:$0xff] %v1895
        %1930 = vst [vmem:[%s498 + $0xd0] sm:$0xff] %v1848
        %1931 = vst [vmem:[%s498 + $0xd8] sm:$0xff] %v1897
        %1932 = vst [vmem:[%s498 + $0xe0] sm:$0xff] %v1851
        %1933 = vst [vmem:[%s498 + $0xe8] sm:$0xff] %v1900
        %1934 = vst [vmem:[%s498 + $0xf0] sm:$0xff] %v1853
        %1935 = vst [vmem:[%s498 + $0xf8] sm:$0xff] %v1902
        %s1936 = sand.u32 %s243, 1
        %s1937 = scalar_lea.sflag [#allocation4], %s1936
        %s1938 = sand.u32 %s243, 1
        %s1939 = smul.addr %s1938, 256
        %s1940 = scalar_lea.vmem [#allocation14], %s1939
        // Predicated region
        $region85: #{tpu_custom_call.1} parent=55 // pred_check
          %p1941 = pneg %p253
        $region86: #{tpu_custom_call.1} parent=55 // pred_check_branch
          %1943 = sbr.rel (%p1941) target = $region88
        $region87: #{tpu_custom_call.1} parent=55 // pred_region
          %s1944 = smul.u32 8, %s31
          %1946 = vsyncadd %s1937, 0
          %s1947 = smul.addr %s1944, 4
          %s1948 = smul.addr %s1947, 8
          %s1949 = scalar_lea.hbm %s9, %s1948
          %s1950 = sshll.u32 %s1940, 4
          %s1951 = int_to_ptr.vmem [resolvable:$true] %s1950
          %s1952 = sshll.u32 %s1949, 4
          %s1953 = int_to_ptr.hbm [resolvable:$true] %s1952
          %1958 = dma.vmem_to_hbm [thread:$0]  %s1951, 4096, %s1953, %s1937, 256, 256, 16
        $region88: #{tpu_custom_call.1} parent=55 // pred_fallthru
          _
      $region56: #{tpu_custom_call.1} parent=5 // pred_fallthru
        _
      %p1959 = scmp.le.s32.totalorder 2, %s26
      // Predicated region
      $region89: #{tpu_custom_call.1} parent=5 // pred_check
        %p1960 = pneg %p1959
      $region90: #{tpu_custom_call.1} parent=5 // pred_check_branch
        %1962 = sbr.rel (%p1960) target = $region92
      $region91: #{tpu_custom_call.1} parent=5 // pred_region
        %s1963 = ssub.s32 %s26, 2
        // Predicated region
        $region93: #{tpu_custom_call.1} parent=91 // pred_check
          %p1964 = pneg %p259
        $region94: #{tpu_custom_call.1} parent=91 // pred_check_branch
          %1966 = sbr.rel (%p1964) target = $region96
        $region95: #{tpu_custom_call.1} parent=91 // pred_region
          %s1967 = sand.u32 %s244, 1
          %s1968 = scalar_lea.sflag [#allocation4], %s1967
          %s1969 = sand.u32 %s244, 1
          %s1970 = smul.addr %s1969, 256
          %s1971 = scalar_lea.vmem [#allocation14], %s1970
          %1973 = dma.done %s1968, 4096
        $region96: #{tpu_custom_call.1} parent=91 // pred_fallthru
          _
      $region92: #{tpu_custom_call.1} parent=5 // pred_fallthru
        _
    $region6: #{tpu_custom_call.1} parent=1 // loop_footer
      %s30 = sadd.s32 1, %s26
    $region7: #{tpu_custom_call.1} parent=1 // loop_footer_branch
      %25 = sbr.rel target = $region3
    $region8: #{tpu_custom_call.1} parent=1 // loop_exit
      _
    %1974 = vsyncpa [#allocation3], 1
    %s1975 = scalar_lea.sflag [#allocation3], 1
    %1976 = vsyncpa %s1975, 1
    %1977 = vsyncpa [#allocation6], 1
    %s1978 = scalar_lea.sflag [#allocation6], 1
    %1979 = vsyncpa %s1978, 1
    %1980 = vsyncpa [#allocation9], 1
    %1981 = vsyncpa [#allocation12], 1
    %1982 = vsyncpa [#allocation4], 1
    %s1983 = scalar_lea.sflag [#allocation4], 1
    %1984 = vsyncpa %s1983, 1

</llo_original>
